<compile_context>
chip_gen: v7x
topology: tpu7x:2x2x1
jax: 0.10.0
libtpu: 0.0.40
codegen_flags: <defaults>
</compile_context>

<pallas_src>
import math

import jax
import jax.numpy as jnp
from jax.experimental import pallas as pl
from jax.experimental.pallas import tpu as pltpu


# --------------------------------------------------------------------------------------
# Pallas kernel
# --------------------------------------------------------------------------------------
def _make_kernel(cfg):
    L, B = cfg["L"], cfg["B"]
    H, D = cfg["H"], cfg["D"]
    enc_deep, dec_deep = cfg["enc_deep"], cfg["dec_deep"]
    out_dim = cfg["out_dim"]
    sum_in = cfg["sum_in"]

    LH = L * H                      # fused encoder width
    LAT = (L + 1) * H               # latent slab width
    D2 = 2 * D                      # fused decoder width (head a | head p)
    O2 = 2 * out_dim

    # mm_w slot layout (matches pack_params)
    SLOT_ENC = 0                          # enc_deep slots
    SLOT_DEC = enc_deep                   # dec_deep slots
    SLOT_FIN = enc_deep + dec_deep        # fused final linear
    SLOT_SEG_ENC = SLOT_FIN + 1           # (LH, LH) block-mean matrix, block = H
    SLOT_SEG_DEC = SLOT_FIN + 2           # (2D, 2D) block-mean matrix, block = D

    # bias slab row layout (matches pack_params)
    ROW_ENC = 0
    ROW_GRU = ROW_ENC + 3 * enc_deep
    ROW_DEC = ROW_GRU + 2
    ROW_FIN = ROW_DEC + 3 * dec_deep

    def leaky(x):                   # nn.LeakyReLU default slope
        return jnp.where(x > 0, x, 0.01 * x)

    def dot(a, b):
        return jnp.dot(a, b, preferred_element_type=jnp.float32)

    def seg_layernorm(x, m, g, be):
        # Per-block LayerNorm (eps=1e-5, biased variance): the block-mean matrix `m`
        # broadcasts each block's mean back over its lanes, and the two reductions
        # E[x], E[x^2] are independent tiny matmuls (f32, so cancellation is harmless).
        mu = dot(x, m)
        sq = dot(x * x, m)
        var = sq - mu * mu
        return (x - mu) * jax.lax.rsqrt(var + 1e-5) * g + be

    def kernel(feat_ref, mm_w_ref, gru_w_ref, bias_ref, out_ref, lat_scr):
        def brow(r, w):                              # one (1, w) bias/gamma/beta row
            return bias_ref[r:r + 1, 0:w]

        # ---------------- fused encoders: one block-diagonal matmul per depth ---------
        m_enc = mm_w_ref[SLOT_SEG_ENC, 0:LH, 0:LH]
        x = feat_ref[...]                                        # (B, sum_in)
        for d in range(enc_deep):
            k_in = sum_in if d == 0 else LH
            w = mm_w_ref[SLOT_ENC + d, 0:k_in, 0:LH]             # block-diag over streams
            x = dot(x, w) + brow(ROW_ENC + 3 * d, LH)
            x = leaky(seg_layernorm(x, m_enc,
                                    brow(ROW_ENC + 3 * d + 1, LH),
                                    brow(ROW_ENC + 3 * d + 2, LH)))
        lat_scr[:, 0:LH] = x                                     # latent slab cols [0, LH)

        # ---------------- GRU over the batch axis (seq_len = B, batch = 1) ------------
        gx = dot(x, gru_w_ref[0:LH, :]) + brow(ROW_GRU, 3 * H)   # ONE matmul: (B, 3H)
        wh = gru_w_ref[LH:LH + H, :]                             # (H, 3H) fused hidden wt
        bh = brow(ROW_GRU + 1, 3 * H)                            # [0 | 0 | b_hn]
        # TODO(synk): wh could be kept resident in the MXU across the serial steps via
        # pltpu.matmul_push_rhs / matmul_acc_lhs / matmul_pop.
        h = jnp.zeros((1, H), jnp.float32)
        for t in range(B):                                       # serial scan, unrolled
            gh = dot(h, wh) + bh                                 # single matmul per step
            rz = jax.nn.sigmoid(gx[t:t + 1, 0:2 * H] + gh[:, 0:2 * H])   # fused r|z gates
            r = rz[:, 0:H]
            zg = rz[:, H:2 * H]
            n = jnp.tanh(gx[t:t + 1, 2 * H:] + r * gh[:, 2 * H:])
            h = (1.0 - zg) * n + zg * h
            lat_scr[t:t + 1, LH:LAT] = h                         # direct row store

        # ---------------- fused decoder heads (a | p along lanes) ---------------------
        m_dec = mm_w_ref[SLOT_SEG_DEC, 0:D2, 0:D2]
        x = lat_scr[...]                                         # (B, (L+1)*H) slab
        for d in range(dec_deep):
            k_in = LAT if d == 0 else D2
            w = mm_w_ref[SLOT_DEC + d, 0:k_in, 0:D2]             # d==0 full, d>0 block-diag
            x = dot(x, w) + brow(ROW_DEC + 3 * d, D2)
            x = leaky(seg_layernorm(x, m_dec,
                                    brow(ROW_DEC + 3 * d + 1, D2),
                                    brow(ROW_DEC + 3 * d + 2, D2)))

        # fused final linears: block-diagonal (2D, 2*out_dim), no concatenates
        fw = mm_w_ref[SLOT_FIN, 0:D2, 0:O2]
        s = jax.nn.sigmoid(dot(x, fw) + brow(ROW_FIN, O2))
        a = s[:, 0:out_dim]
        p = (2.0 * jnp.pi) * s[:, out_dim:]
        out_ref[:, 0:out_dim] = a * jnp.cos(p)
        out_ref[:, out_dim:] = a * jnp.sin(p)

    return kernel


def ddsp_subenv_forward(packed, cfg):
    B, out_dim = cfg["B"], cfg["out_dim"]
    L, H = cfg["L"], cfg["H"]
    vmem = pl.BlockSpec(memory_space=pltpu.MemorySpace.VMEM)
    out = pl.pallas_call(
        _make_kernel(cfg),
        out_shape=jax.ShapeDtypeStruct((B, 2 * out_dim), jnp.float32),
        in_specs=[vmem] * len(packed),
        out_specs=vmem,
        scratch_shapes=[pltpu.VMEM((B, (L + 1) * H), jnp.float32)],
    )(*packed)
    return out[:, :out_dim], out[:, out_dim:]


# --------------------------------------------------------------------------------------
# Raw (PyTorch-layout) parameters, pure-JAX reference mirroring torch ops, and packer.
# --------------------------------------------------------------------------------------
def init_raw_params(key, in_sizes, H, D, enc_deep, dec_deep, out_dim):
    state = [key]

    def nk():
        state[0], sub = jax.random.split(state[0])
        return sub

    def w(fo, fi):  # torch nn.Linear / nn.GRU weight layout: (out_features, in_features)
        return jax.random.normal(nk(), (fo, fi), jnp.float32) / math.sqrt(fi)

    def vec(n, scale=0.01):
        return scale * jax.random.normal(nk(), (n,), jnp.float32)

    L = len(in_sizes)
    enc = []
    for in_size in in_sizes:
        dims = [in_size] + [H] * enc_deep
        layers = []
        for d in range(enc_deep):
            layers.append(dict(w=w(dims[d + 1], dims[d]), b=vec(dims[d + 1]),
                               g=1.0 + vec(dims[d + 1], 0.1), be=vec(dims[d + 1])))
        enc.append(layers)

    gru = dict(w_ih=w(3 * H, L * H), w_hh=w(3 * H, H),
               b_ih=vec(3 * H), b_hh=vec(3 * H))

    def decoder():
        dims = [(L + 1) * H] + [D] * dec_deep
        layers = []
        for d in range(dec_deep):
            layers.append(dict(w=w(dims[d + 1], dims[d]), b=vec(dims[d + 1]),
                               g=1.0 + vec(dims[d + 1], 0.1), be=vec(dims[d + 1])))
        return dict(layers=layers, fw=w(out_dim, D), fb=vec(out_dim))

    return dict(enc=enc, gru=gru, dec_a=decoder(), dec_p=decoder())


def torch_reference(features, raw, cfg):
    """Direct transliteration of the PyTorch module (weights in torch layout)."""
    H, B = cfg["H"], cfg["B"]

    def linear(x, w, b):
        return x @ w.T + b

    def ln(x, g, be):
        mu = jnp.mean(x, -1, keepdims=True)
        var = jnp.mean((x - mu) ** 2, -1, keepdims=True)
        return (x - mu) / jnp.sqrt(var + 1e-5) * g + be

    def leaky(x):
        return jnp.where(x > 0, x, 0.01 * x)

    def mlp(x, layers):
        for l in layers:
            x = leaky(ln(linear(x, l["w"], l["b"]), l["g"], l["be"]))
        return x

    lats = [mlp(features[i], raw["enc"][i]) for i in range(len(features))]
    xcat = jnp.concatenate(lats, axis=-1)                    # (B, L*H)

    g = raw["gru"]
    h = jnp.zeros((H,), jnp.float32)
    zs = []
    for t in range(B):                                       # nn.GRU equations, gates r,z,n
        gi = g["w_ih"] @ xcat[t] + g["b_ih"]
        gh = g["w_hh"] @ h + g["b_hh"]
        r = jax.nn.sigmoid(gi[:H] + gh[:H])
        z = jax.nn.sigmoid(gi[H:2 * H] + gh[H:2 * H])
        n = jnp.tanh(gi[2 * H:] + r * gh[2 * H:])
        h = (1.0 - z) * n + z * h
        zs.append(h)
    z_seq = jnp.stack(zs, axis=0)                            # (B, H)

    latent = jnp.concatenate(lats + [z_seq], axis=-1)

    def head(dec):
        x = mlp(latent, dec["layers"])
        return linear(x, dec["fw"], dec["fb"])

    a = jax.nn.sigmoid(head(raw["dec_a"]))
    p = 2.0 * jnp.pi * jax.nn.sigmoid(head(raw["dec_p"]))
    return a * jnp.cos(p), a * jnp.sin(p)


def pack_params(raw, features, cfg):
    """Host-side packing into FOUR arrays:
       feat  : (B, sum_in)                stacked feature slab
       mm_w  : (enc_deep+dec_deep+3, K, W) all non-GRU weights + segmented-LN matrices
       gru_w : (L*H + H, 3H)              fused [W_ih^T ; W_hh^T], gates r|z|n
       bias  : (rows, Wb)                 all biases / gamma / beta rows
    """
    L, B, H, D = cfg["L"], cfg["B"], cfg["H"], cfg["D"]
    enc_deep, dec_deep, out_dim = cfg["enc_deep"], cfg["dec_deep"], cfg["out_dim"]
    in_sizes = cfg["in_sizes"]
    sum_in = sum(in_sizes)
    LH, LAT, D2, O2 = L * H, (L + 1) * H, 2 * D, 2 * out_dim

    feat = jnp.concatenate(features, axis=-1)                # (B, sum_in)

    Kmax = max(sum_in, LH, LAT, D2)
    Wmax = max(LH, D2, O2)
    mm_w = jnp.zeros((enc_deep + dec_deep + 3, Kmax, Wmax), jnp.float32)

    # encoder: block-diagonal over streams per depth
    for d in range(enc_deep):
        roff = 0
        for i in range(L):
            wt = raw["enc"][i][d]["w"].T                     # (in_i or H, H)
            mm_w = mm_w.at[d, roff:roff + wt.shape[0], i * H:(i + 1) * H].set(wt)
            roff += wt.shape[0]

    # decoder: depth 0 = [Wa | Wp] (both heads share the latent); deeper = block-diagonal
    for d in range(dec_deep):
        wa = raw["dec_a"]["layers"][d]["w"].T
        wp = raw["dec_p"]["layers"][d]["w"].T
        if d == 0:
            mm_w = mm_w.at[enc_deep + d, 0:LAT, 0:D].set(wa)
            mm_w = mm_w.at[enc_deep + d, 0:LAT, D:D2].set(wp)
        else:
            mm_w = mm_w.at[enc_deep + d, 0:D, 0:D].set(wa)
            mm_w = mm_w.at[enc_deep + d, D:D2, D:D2].set(wp)

    # fused final linears: block-diagonal (2D, 2*out_dim)
    slot_fin = enc_deep + dec_deep
    mm_w = mm_w.at[slot_fin, 0:D, 0:out_dim].set(raw["dec_a"]["fw"].T)
    mm_w = mm_w.at[slot_fin, D:D2, out_dim:O2].set(raw["dec_p"]["fw"].T)

    # segmented-LayerNorm block-mean matrices (reductions run on the MXU)
    def seg_mat(width, blk):
        idx = jnp.arange(width) // blk
        return jnp.where(idx[:, None] == idx[None, :], 1.0 / blk, 0.0).astype(jnp.float32)

    mm_w = mm_w.at[slot_fin + 1, 0:LH, 0:LH].set(seg_mat(LH, H))
    mm_w = mm_w.at[slot_fin + 2, 0:D2, 0:D2].set(seg_mat(D2, D))

    # GRU: fused [W_ih^T ; W_hh^T], r/z hidden biases folded into the input bias
    g = raw["gru"]
    gru_w = jnp.concatenate([g["w_ih"].T, g["w_hh"].T], axis=0)       # (LH + H, 3H)
    bias_x = jnp.concatenate([g["b_ih"][:2 * H] + g["b_hh"][:2 * H],  # fold b_hr, b_hz
                              g["b_ih"][2 * H:]])                     # b_in only
    bias_h = jnp.concatenate([jnp.zeros((2 * H,), jnp.float32), g["b_hh"][2 * H:]])

    # all biases / LayerNorm affine params in one small slab
    Wb = max(LH, 3 * H, D2, O2)

    def pad(v):
        return jnp.zeros((Wb,), jnp.float32).at[:v.shape[0]].set(v)

    rows = []
    for d in range(enc_deep):
        for k in ("b", "g", "be"):
            rows.append(pad(jnp.concatenate([raw["enc"][i][d][k] for i in range(L)])))
    rows.append(pad(bias_x))
    rows.append(pad(bias_h))
    for d in range(dec_deep):
        for k in ("b", "g", "be"):
            rows.append(pad(jnp.concatenate([raw["dec_a"]["layers"][d][k],
                                             raw["dec_p"]["layers"][d][k]])))
    rows.append(pad(jnp.concatenate([raw["dec_a"]["fb"], raw["dec_p"]["fb"]])))
    bias = jnp.stack(rows)                                            # (3e+2+3d+1, Wb)

    return feat, mm_w, gru_w, bias


# --------------------------------------------------------------------------------------
if __name__ == "__main__":
    # Small shapes consistent with DDSP_SubEnv.__init__ / forward
    B = 8                       # batch (also the GRU sequence length after unsqueeze(0))
    input_sizes = [16, 24]      # two feature streams
    enc_hidden = 32
    dec_hidden = 32
    enc_deep = 2
    dec_deep = 2
    param_per_env = 4
    N_filter_bank = 8
    out_dim = N_filter_bank * param_per_env   # 32
    L = len(input_sizes)

    cfg = dict(L=L, B=B, H=enc_hidden, D=dec_hidden,
               enc_deep=enc_deep, dec_deep=dec_deep, out_dim=out_dim,
               in_sizes=tuple(input_sizes), sum_in=sum(input_sizes))

    key = jax.random.PRNGKey(0)
    kf, kp = jax.random.split(key)
    fkeys = jax.random.split(kf, L)
    features = [jax.random.normal(fkeys[i], (B, s), jnp.float32)
                for i, s in enumerate(input_sizes)]
    raw = init_raw_params(kp, input_sizes, enc_hidden, dec_hidden,
                          enc_deep, dec_deep, out_dim)
    packed = pack_params(raw, features, cfg)

    real, imag = ddsp_subenv_forward(packed, cfg)
    jax.block_until_ready((real, imag))

    # pure-JAX reference built directly from the torch-layout weights
    real_ref, imag_ref = torch_reference(features, raw, cfg)
    assert real.shape == (B, out_dim) and imag.shape == (B, out_dim)
    assert jnp.allclose(real, real_ref, rtol=1e-3, atol=1e-3), \
        float(jnp.max(jnp.abs(real - real_ref)))
    assert jnp.allclose(imag, imag_ref, rtol=1e-3, atol=1e-3), \
        float(jnp.max(jnp.abs(imag - imag_ref)))

    print("KERNEL_OK")
</pallas_src>

<mosaic_0001>
module attributes {stable_mosaic.version = 11 : i64} {
  func.func @kernel(%arg0: memref<8x40xf32, #tpu.memory_space<vmem>>, %arg1: memref<7x96x64xf32, #tpu.memory_space<vmem>>, %arg2: memref<96x96xf32, #tpu.memory_space<vmem>>, %arg3: memref<15x96xf32, #tpu.memory_space<vmem>>, %arg4: memref<8x64xf32, #tpu.memory_space<vmem>>, %arg5: memref<8x96xf32, #tpu.memory_space<vmem>>) attributes {dimension_semantics = [], scalar_prefetch = 0 : i64, scratch_operands = 1 : i64, tpu.core_type = #tpu.core_type<tc>} {
    %c5 = arith.constant 5 : index
    %c0 = arith.constant 0 : index
    %c0_0 = arith.constant 0 : index
    %0 = vector.load %arg1[%c5, %c0, %c0_0] : memref<7x96x64xf32, #tpu.memory_space<vmem>>, vector<1x64x64xf32>
    %1 = vector.shape_cast %0 : vector<1x64x64xf32> to vector<64x64xf32>
    %c0_1 = arith.constant 0 : index
    %c0_2 = arith.constant 0 : index
    %2 = vector.load %arg0[%c0_1, %c0_2] : memref<8x40xf32, #tpu.memory_space<vmem>>, vector<8x40xf32>
    %c0_3 = arith.constant 0 : index
    %c0_4 = arith.constant 0 : index
    %c0_5 = arith.constant 0 : index
    %3 = vector.load %arg1[%c0_3, %c0_4, %c0_5] : memref<7x96x64xf32, #tpu.memory_space<vmem>>, vector<1x40x64xf32>
    %4 = vector.shape_cast %3 : vector<1x40x64xf32> to vector<40x64xf32>
    %cst = arith.constant dense<0.000000e+00> : vector<8x64xf32>
    %5 = tpu.matmul %2, %4, %cst {dimension_numbers = #tpu.dot_dimension_numbers<[1], [0], [0], [1], [0, 0, 1, 1], [], []>} : vector<8x40xf32>, vector<40x64xf32>, vector<8x64xf32> -> vector<8x64xf32>
    %c0_6 = arith.constant 0 : index
    %c0_7 = arith.constant 0 : index
    %6 = vector.load %arg3[%c0_6, %c0_7] : memref<15x96xf32, #tpu.memory_space<vmem>>, vector<1x64xf32>
    %7 = vector.broadcast %6 : vector<1x64xf32> to vector<8x64xf32>
    %8 = arith.addf %5, %7 : vector<8x64xf32>
    %c1 = arith.constant 1 : index
    %c0_8 = arith.constant 0 : index
    %9 = vector.load %arg3[%c1, %c0_8] : memref<15x96xf32, #tpu.memory_space<vmem>>, vector<1x64xf32>
    %c2 = arith.constant 2 : index
    %c0_9 = arith.constant 0 : index
    %10 = vector.load %arg3[%c2, %c0_9] : memref<15x96xf32, #tpu.memory_space<vmem>>, vector<1x64xf32>
    %cst_10 = arith.constant dense<0.000000e+00> : vector<8x64xf32>
    %11 = tpu.matmul %8, %1, %cst_10 {dimension_numbers = #tpu.dot_dimension_numbers<[1], [0], [0], [1], [0, 0, 1, 1], [], []>} : vector<8x64xf32>, vector<64x64xf32>, vector<8x64xf32> -> vector<8x64xf32>
    %12 = arith.mulf %8, %8 : vector<8x64xf32>
    %cst_11 = arith.constant dense<0.000000e+00> : vector<8x64xf32>
    %13 = tpu.matmul %12, %1, %cst_11 {dimension_numbers = #tpu.dot_dimension_numbers<[1], [0], [0], [1], [0, 0, 1, 1], [], []>} : vector<8x64xf32>, vector<64x64xf32>, vector<8x64xf32> -> vector<8x64xf32>
    %14 = arith.mulf %11, %11 : vector<8x64xf32>
    %15 = arith.subf %13, %14 : vector<8x64xf32>
    %16 = arith.subf %8, %11 : vector<8x64xf32>
    %cst_12 = arith.constant 9.99999974E-6 : f32
    %17 = vector.broadcast %cst_12 : f32 to vector<8x64xf32>
    %18 = arith.addf %15, %17 : vector<8x64xf32>
    %19 = math.rsqrt %18 : vector<8x64xf32>
    %20 = arith.mulf %16, %19 : vector<8x64xf32>
    %21 = vector.broadcast %9 : vector<1x64xf32> to vector<8x64xf32>
    %22 = arith.mulf %20, %21 : vector<8x64xf32>
    %23 = vector.broadcast %10 : vector<1x64xf32> to vector<8x64xf32>
    %24 = arith.addf %22, %23 : vector<8x64xf32>
    %cst_13 = arith.constant 0.000000e+00 : f32
    %25 = vector.broadcast %cst_13 : f32 to vector<8x64xf32>
    %26 = arith.cmpf ogt, %24, %25 : vector<8x64xf32>
    %cst_14 = arith.constant 0.00999999977 : f32
    %27 = vector.broadcast %cst_14 : f32 to vector<8x64xf32>
    %28 = arith.mulf %27, %24 : vector<8x64xf32>
    %29 = arith.select %26, %24, %28 : vector<8x64xi1>, vector<8x64xf32>
    %c1_15 = arith.constant 1 : index
    %c0_16 = arith.constant 0 : index
    %c0_17 = arith.constant 0 : index
    %30 = vector.load %arg1[%c1_15, %c0_16, %c0_17] : memref<7x96x64xf32, #tpu.memory_space<vmem>>, vector<1x64x64xf32>
    %31 = vector.shape_cast %30 : vector<1x64x64xf32> to vector<64x64xf32>
    %cst_18 = arith.constant dense<0.000000e+00> : vector<8x64xf32>
    %32 = tpu.matmul %29, %31, %cst_18 {dimension_numbers = #tpu.dot_dimension_numbers<[1], [0], [0], [1], [0, 0, 1, 1], [], []>} : vector<8x64xf32>, vector<64x64xf32>, vector<8x64xf32> -> vector<8x64xf32>
    %c3 = arith.constant 3 : index
    %c0_19 = arith.constant 0 : index
    %33 = vector.load %arg3[%c3, %c0_19] : memref<15x96xf32, #tpu.memory_space<vmem>>, vector<1x64xf32>
    %34 = vector.broadcast %33 : vector<1x64xf32> to vector<8x64xf32>
    %35 = arith.addf %32, %34 : vector<8x64xf32>
    %c4 = arith.constant 4 : index
    %c0_20 = arith.constant 0 : index
    %36 = vector.load %arg3[%c4, %c0_20] : memref<15x96xf32, #tpu.memory_space<vmem>>, vector<1x64xf32>
    %c5_21 = arith.constant 5 : index
    %c0_22 = arith.constant 0 : index
    %37 = vector.load %arg3[%c5_21, %c0_22] : memref<15x96xf32, #tpu.memory_space<vmem>>, vector<1x64xf32>
    %cst_23 = arith.constant dense<0.000000e+00> : vector<8x64xf32>
    %38 = tpu.matmul %35, %1, %cst_23 {dimension_numbers = #tpu.dot_dimension_numbers<[1], [0], [0], [1], [0, 0, 1, 1], [], []>} : vector<8x64xf32>, vector<64x64xf32>, vector<8x64xf32> -> vector<8x64xf32>
    %39 = arith.mulf %35, %35 : vector<8x64xf32>
    %cst_24 = arith.constant dense<0.000000e+00> : vector<8x64xf32>
    %40 = tpu.matmul %39, %1, %cst_24 {dimension_numbers = #tpu.dot_dimension_numbers<[1], [0], [0], [1], [0, 0, 1, 1], [], []>} : vector<8x64xf32>, vector<64x64xf32>, vector<8x64xf32> -> vector<8x64xf32>
    %41 = arith.mulf %38, %38 : vector<8x64xf32>
    %42 = arith.subf %40, %41 : vector<8x64xf32>
    %43 = arith.subf %35, %38 : vector<8x64xf32>
    %cst_25 = arith.constant 9.99999974E-6 : f32
    %44 = vector.broadcast %cst_25 : f32 to vector<8x64xf32>
    %45 = arith.addf %42, %44 : vector<8x64xf32>
    %46 = math.rsqrt %45 : vector<8x64xf32>
    %47 = arith.mulf %43, %46 : vector<8x64xf32>
    %48 = vector.broadcast %36 : vector<1x64xf32> to vector<8x64xf32>
    %49 = arith.mulf %47, %48 : vector<8x64xf32>
    %50 = vector.broadcast %37 : vector<1x64xf32> to vector<8x64xf32>
    %51 = arith.addf %49, %50 : vector<8x64xf32>
    %cst_26 = arith.constant 0.000000e+00 : f32
    %52 = vector.broadcast %cst_26 : f32 to vector<8x64xf32>
    %53 = arith.cmpf ogt, %51, %52 : vector<8x64xf32>
    %cst_27 = arith.constant 0.00999999977 : f32
    %54 = vector.broadcast %cst_27 : f32 to vector<8x64xf32>
    %55 = arith.mulf %54, %51 : vector<8x64xf32>
    %56 = arith.select %53, %51, %55 : vector<8x64xi1>, vector<8x64xf32>
    %c0_28 = arith.constant 0 : index
    %c0_29 = arith.constant 0 : index
    %57 = vector.load %arg5[%c0_28, %c0_29] : memref<8x96xf32, #tpu.memory_space<vmem>>, vector<8x64xf32>
    tpu.vector_store %arg5[%c0_28, %c0_29], %56 {strides = array<i32>} : memref<8x96xf32, #tpu.memory_space<vmem>>, vector<8x64xf32>,
    %c0_30 = arith.constant 0 : index
    %c0_31 = arith.constant 0 : index
    %58 = vector.load %arg2[%c0_30, %c0_31] : memref<96x96xf32, #tpu.memory_space<vmem>>, vector<64x96xf32>
    %cst_32 = arith.constant dense<0.000000e+00> : vector<8x96xf32>
    %59 = tpu.matmul %56, %58, %cst_32 {dimension_numbers = #tpu.dot_dimension_numbers<[1], [0], [0], [1], [0, 0, 1, 1], [], []>} : vector<8x64xf32>, vector<64x96xf32>, vector<8x96xf32> -> vector<8x96xf32>
    %c6 = arith.constant 6 : index
    %c0_33 = arith.constant 0 : index
    %60 = vector.load %arg3[%c6, %c0_33] : memref<15x96xf32, #tpu.memory_space<vmem>>, vector<1x96xf32>
    %61 = vector.broadcast %60 : vector<1x96xf32> to vector<8x96xf32>
    %62 = arith.addf %59, %61 : vector<8x96xf32>
    %c64 = arith.constant 64 : index
    %c0_34 = arith.constant 0 : index
    %63 = vector.load %arg2[%c64, %c0_34] : memref<96x96xf32, #tpu.memory_space<vmem>>, vector<32x96xf32>
    %c7 = arith.constant 7 : index
    %c0_35 = arith.constant 0 : index
    %64 = vector.load %arg3[%c7, %c0_35] : memref<15x96xf32, #tpu.memory_space<vmem>>, vector<1x96xf32>
    %cst_36 = arith.constant 0.000000e+00 : f32
    %65 = vector.broadcast %cst_36 : f32 to vector<1x32xf32>
    %cst_37 = arith.constant dense<0.000000e+00> : vector<1x96xf32>
    %66 = tpu.matmul %65, %63, %cst_37 {dimension_numbers = #tpu.dot_dimension_numbers<[1], [0], [0], [1], [0, 0, 1, 1], [], []>} : vector<1x32xf32>, vector<32x96xf32>, vector<1x96xf32> -> vector<1x96xf32>
    %67 = arith.addf %66, %64 : vector<1x96xf32>
    %68 = vector.extract_strided_slice %62 {offsets = [0, 0], sizes = [1, 64], strides = [1, 1]} : vector<8x96xf32> to vector<1x64xf32>
    %69 = vector.extract_strided_slice %67 {offsets = [0, 0], sizes = [1, 64], strides = [1, 1]} : vector<1x96xf32> to vector<1x64xf32>
    %70 = arith.addf %68, %69 : vector<1x64xf32>
    %71 = arith.negf %70 : vector<1x64xf32>
    %72 = math.exp %71 : vector<1x64xf32>
    %cst_38 = arith.constant 1.000000e+00 : f32
    %73 = vector.broadcast %cst_38 : f32 to vector<1x64xf32>
    %74 = arith.addf %73, %72 : vector<1x64xf32>
    %75 = arith.divf %73, %74 : vector<1x64xf32>
    %76 = vector.extract_strided_slice %75 {offsets = [0, 0], sizes = [1, 32], strides = [1, 1]} : vector<1x64xf32> to vector<1x32xf32>
    %77 = vector.extract_strided_slice %75 {offsets = [0, 32], sizes = [1, 32], strides = [1, 1]} : vector<1x64xf32> to vector<1x32xf32>
    %78 = vector.extract_strided_slice %62 {offsets = [0, 64], sizes = [1, 32], strides = [1, 1]} : vector<8x96xf32> to vector<1x32xf32>
    %79 = vector.extract_strided_slice %67 {offsets = [0, 64], sizes = [1, 32], strides = [1, 1]} : vector<1x96xf32> to vector<1x32xf32>
    %80 = arith.mulf %76, %79 : vector<1x32xf32>
    %81 = arith.addf %78, %80 : vector<1x32xf32>
    %82 = math.tanh %81 : vector<1x32xf32>
    %cst_39 = arith.constant 1.000000e+00 : f32
    %83 = vector.broadcast %cst_39 : f32 to vector<1x32xf32>
    %84 = arith.subf %83, %77 : vector<1x32xf32>
    %85 = arith.mulf %84, %82 : vector<1x32xf32>
    %86 = arith.mulf %77, %65 : vector<1x32xf32>
    %87 = arith.addf %85, %86 : vector<1x32xf32>
    %c0_40 = arith.constant 0 : index
    %c64_41 = arith.constant 64 : index
    %88 = vector.load %arg5[%c0_40, %c64_41] : memref<8x96xf32, #tpu.memory_space<vmem>>, vector<1x32xf32>
    tpu.vector_store %arg5[%c0_40, %c64_41], %87 {strides = array<i32>} : memref<8x96xf32, #tpu.memory_space<vmem>>, vector<1x32xf32>,
    %cst_42 = arith.constant dense<0.000000e+00> : vector<1x96xf32>
    %89 = tpu.matmul %87, %63, %cst_42 {dimension_numbers = #tpu.dot_dimension_numbers<[1], [0], [0], [1], [0, 0, 1, 1], [], []>} : vector<1x32xf32>, vector<32x96xf32>, vector<1x96xf32> -> vector<1x96xf32>
    %90 = arith.addf %89, %64 : vector<1x96xf32>
    %91 = vector.extract_strided_slice %62 {offsets = [1, 0], sizes = [1, 64], strides = [1, 1]} : vector<8x96xf32> to vector<1x64xf32>
    %92 = vector.extract_strided_slice %90 {offsets = [0, 0], sizes = [1, 64], strides = [1, 1]} : vector<1x96xf32> to vector<1x64xf32>
    %93 = arith.addf %91, %92 : vector<1x64xf32>
    %94 = arith.negf %93 : vector<1x64xf32>
    %95 = math.exp %94 : vector<1x64xf32>
    %cst_43 = arith.constant 1.000000e+00 : f32
    %96 = vector.broadcast %cst_43 : f32 to vector<1x64xf32>
    %97 = arith.addf %96, %95 : vector<1x64xf32>
    %98 = arith.divf %96, %97 : vector<1x64xf32>
    %99 = vector.extract_strided_slice %98 {offsets = [0, 0], sizes = [1, 32], strides = [1, 1]} : vector<1x64xf32> to vector<1x32xf32>
    %100 = vector.extract_strided_slice %98 {offsets = [0, 32], sizes = [1, 32], strides = [1, 1]} : vector<1x64xf32> to vector<1x32xf32>
    %101 = vector.extract_strided_slice %62 {offsets = [1, 64], sizes = [1, 32], strides = [1, 1]} : vector<8x96xf32> to vector<1x32xf32>
    %102 = vector.extract_strided_slice %90 {offsets = [0, 64], sizes = [1, 32], strides = [1, 1]} : vector<1x96xf32> to vector<1x32xf32>
    %103 = arith.mulf %99, %102 : vector<1x32xf32>
    %104 = arith.addf %101, %103 : vector<1x32xf32>
    %105 = math.tanh %104 : vector<1x32xf32>
    %cst_44 = arith.constant 1.000000e+00 : f32
    %106 = vector.broadcast %cst_44 : f32 to vector<1x32xf32>
    %107 = arith.subf %106, %100 : vector<1x32xf32>
    %108 = arith.mulf %107, %105 : vector<1x32xf32>
    %109 = arith.mulf %100, %87 : vector<1x32xf32>
    %110 = arith.addf %108, %109 : vector<1x32xf32>
    %c1_45 = arith.constant 1 : index
    %c64_46 = arith.constant 64 : index
    %111 = vector.load %arg5[%c1_45, %c64_46] : memref<8x96xf32, #tpu.memory_space<vmem>>, vector<1x32xf32>
    tpu.vector_store %arg5[%c1_45, %c64_46], %110 {strides = array<i32>} : memref<8x96xf32, #tpu.memory_space<vmem>>, vector<1x32xf32>,
    %cst_47 = arith.constant dense<0.000000e+00> : vector<1x96xf32>
    %112 = tpu.matmul %110, %63, %cst_47 {dimension_numbers = #tpu.dot_dimension_numbers<[1], [0], [0], [1], [0, 0, 1, 1], [], []>} : vector<1x32xf32>, vector<32x96xf32>, vector<1x96xf32> -> vector<1x96xf32>
    %113 = arith.addf %112, %64 : vector<1x96xf32>
    %114 = vector.extract_strided_slice %62 {offsets = [2, 0], sizes = [1, 64], strides = [1, 1]} : vector<8x96xf32> to vector<1x64xf32>
    %115 = vector.extract_strided_slice %113 {offsets = [0, 0], sizes = [1, 64], strides = [1, 1]} : vector<1x96xf32> to vector<1x64xf32>
    %116 = arith.addf %114, %115 : vector<1x64xf32>
    %117 = arith.negf %116 : vector<1x64xf32>
    %118 = math.exp %117 : vector<1x64xf32>
    %cst_48 = arith.constant 1.000000e+00 : f32
    %119 = vector.broadcast %cst_48 : f32 to vector<1x64xf32>
    %120 = arith.addf %119, %118 : vector<1x64xf32>
    %121 = arith.divf %119, %120 : vector<1x64xf32>
    %122 = vector.extract_strided_slice %121 {offsets = [0, 0], sizes = [1, 32], strides = [1, 1]} : vector<1x64xf32> to vector<1x32xf32>
    %123 = vector.extract_strided_slice %121 {offsets = [0, 32], sizes = [1, 32], strides = [1, 1]} : vector<1x64xf32> to vector<1x32xf32>
    %124 = vector.extract_strided_slice %62 {offsets = [2, 64], sizes = [1, 32], strides = [1, 1]} : vector<8x96xf32> to vector<1x32xf32>
    %125 = vector.extract_strided_slice %113 {offsets = [0, 64], sizes = [1, 32], strides = [1, 1]} : vector<1x96xf32> to vector<1x32xf32>
    %126 = arith.mulf %122, %125 : vector<1x32xf32>
    %127 = arith.addf %124, %126 : vector<1x32xf32>
    %128 = math.tanh %127 : vector<1x32xf32>
    %cst_49 = arith.constant 1.000000e+00 : f32
    %129 = vector.broadcast %cst_49 : f32 to vector<1x32xf32>
    %130 = arith.subf %129, %123 : vector<1x32xf32>
    %131 = arith.mulf %130, %128 : vector<1x32xf32>
    %132 = arith.mulf %123, %110 : vector<1x32xf32>
    %133 = arith.addf %131, %132 : vector<1x32xf32>
    %c2_50 = arith.constant 2 : index
    %c64_51 = arith.constant 64 : index
    %134 = vector.load %arg5[%c2_50, %c64_51] : memref<8x96xf32, #tpu.memory_space<vmem>>, vector<1x32xf32>
    tpu.vector_store %arg5[%c2_50, %c64_51], %133 {strides = array<i32>} : memref<8x96xf32, #tpu.memory_space<vmem>>, vector<1x32xf32>,
    %cst_52 = arith.constant dense<0.000000e+00> : vector<1x96xf32>
    %135 = tpu.matmul %133, %63, %cst_52 {dimension_numbers = #tpu.dot_dimension_numbers<[1], [0], [0], [1], [0, 0, 1, 1], [], []>} : vector<1x32xf32>, vector<32x96xf32>, vector<1x96xf32> -> vector<1x96xf32>
    %136 = arith.addf %135, %64 : vector<1x96xf32>
    %137 = vector.extract_strided_slice %62 {offsets = [3, 0], sizes = [1, 64], strides = [1, 1]} : vector<8x96xf32> to vector<1x64xf32>
    %138 = vector.extract_strided_slice %136 {offsets = [0, 0], sizes = [1, 64], strides = [1, 1]} : vector<1x96xf32> to vector<1x64xf32>
    %139 = arith.addf %137, %138 : vector<1x64xf32>
    %140 = arith.negf %139 : vector<1x64xf32>
    %141 = math.exp %140 : vector<1x64xf32>
    %cst_53 = arith.constant 1.000000e+00 : f32
    %142 = vector.broadcast %cst_53 : f32 to vector<1x64xf32>
    %143 = arith.addf %142, %141 : vector<1x64xf32>
    %144 = arith.divf %142, %143 : vector<1x64xf32>
    %145 = vector.extract_strided_slice %144 {offsets = [0, 0], sizes = [1, 32], strides = [1, 1]} : vector<1x64xf32> to vector<1x32xf32>
    %146 = vector.extract_strided_slice %144 {offsets = [0, 32], sizes = [1, 32], strides = [1, 1]} : vector<1x64xf32> to vector<1x32xf32>
    %147 = vector.extract_strided_slice %62 {offsets = [3, 64], sizes = [1, 32], strides = [1, 1]} : vector<8x96xf32> to vector<1x32xf32>
    %148 = vector.extract_strided_slice %136 {offsets = [0, 64], sizes = [1, 32], strides = [1, 1]} : vector<1x96xf32> to vector<1x32xf32>
    %149 = arith.mulf %145, %148 : vector<1x32xf32>
    %150 = arith.addf %147, %149 : vector<1x32xf32>
    %151 = math.tanh %150 : vector<1x32xf32>
    %cst_54 = arith.constant 1.000000e+00 : f32
    %152 = vector.broadcast %cst_54 : f32 to vector<1x32xf32>
    %153 = arith.subf %152, %146 : vector<1x32xf32>
    %154 = arith.mulf %153, %151 : vector<1x32xf32>
    %155 = arith.mulf %146, %133 : vector<1x32xf32>
    %156 = arith.addf %154, %155 : vector<1x32xf32>
    %c3_55 = arith.constant 3 : index
    %c64_56 = arith.constant 64 : index
    %157 = vector.load %arg5[%c3_55, %c64_56] : memref<8x96xf32, #tpu.memory_space<vmem>>, vector<1x32xf32>
    tpu.vector_store %arg5[%c3_55, %c64_56], %156 {strides = array<i32>} : memref<8x96xf32, #tpu.memory_space<vmem>>, vector<1x32xf32>,
    %cst_57 = arith.constant dense<0.000000e+00> : vector<1x96xf32>
    %158 = tpu.matmul %156, %63, %cst_57 {dimension_numbers = #tpu.dot_dimension_numbers<[1], [0], [0], [1], [0, 0, 1, 1], [], []>} : vector<1x32xf32>, vector<32x96xf32>, vector<1x96xf32> -> vector<1x96xf32>
    %159 = arith.addf %158, %64 : vector<1x96xf32>
    %160 = vector.extract_strided_slice %62 {offsets = [4, 0], sizes = [1, 64], strides = [1, 1]} : vector<8x96xf32> to vector<1x64xf32>
    %161 = vector.extract_strided_slice %159 {offsets = [0, 0], sizes = [1, 64], strides = [1, 1]} : vector<1x96xf32> to vector<1x64xf32>
    %162 = arith.addf %160, %161 : vector<1x64xf32>
    %163 = arith.negf %162 : vector<1x64xf32>
    %164 = math.exp %163 : vector<1x64xf32>
    %cst_58 = arith.constant 1.000000e+00 : f32
    %165 = vector.broadcast %cst_58 : f32 to vector<1x64xf32>
    %166 = arith.addf %165, %164 : vector<1x64xf32>
    %167 = arith.divf %165, %166 : vector<1x64xf32>
    %168 = vector.extract_strided_slice %167 {offsets = [0, 0], sizes = [1, 32], strides = [1, 1]} : vector<1x64xf32> to vector<1x32xf32>
    %169 = vector.extract_strided_slice %167 {offsets = [0, 32], sizes = [1, 32], strides = [1, 1]} : vector<1x64xf32> to vector<1x32xf32>
    %170 = vector.extract_strided_slice %62 {offsets = [4, 64], sizes = [1, 32], strides = [1, 1]} : vector<8x96xf32> to vector<1x32xf32>
    %171 = vector.extract_strided_slice %159 {offsets = [0, 64], sizes = [1, 32], strides = [1, 1]} : vector<1x96xf32> to vector<1x32xf32>
    %172 = arith.mulf %168, %171 : vector<1x32xf32>
    %173 = arith.addf %170, %172 : vector<1x32xf32>
    %174 = math.tanh %173 : vector<1x32xf32>
    %cst_59 = arith.constant 1.000000e+00 : f32
    %175 = vector.broadcast %cst_59 : f32 to vector<1x32xf32>
    %176 = arith.subf %175, %169 : vector<1x32xf32>
    %177 = arith.mulf %176, %174 : vector<1x32xf32>
    %178 = arith.mulf %169, %156 : vector<1x32xf32>
    %179 = arith.addf %177, %178 : vector<1x32xf32>
    %c4_60 = arith.constant 4 : index
    %c64_61 = arith.constant 64 : index
    %180 = vector.load %arg5[%c4_60, %c64_61] : memref<8x96xf32, #tpu.memory_space<vmem>>, vector<1x32xf32>
    tpu.vector_store %arg5[%c4_60, %c64_61], %179 {strides = array<i32>} : memref<8x96xf32, #tpu.memory_space<vmem>>, vector<1x32xf32>,
    %cst_62 = arith.constant dense<0.000000e+00> : vector<1x96xf32>
    %181 = tpu.matmul %179, %63, %cst_62 {dimension_numbers = #tpu.dot_dimension_numbers<[1], [0], [0], [1], [0, 0, 1, 1], [], []>} : vector<1x32xf32>, vector<32x96xf32>, vector<1x96xf32> -> vector<1x96xf32>
    %182 = arith.addf %181, %64 : vector<1x96xf32>
    %183 = vector.extract_strided_slice %62 {offsets = [5, 0], sizes = [1, 64], strides = [1, 1]} : vector<8x96xf32> to vector<1x64xf32>
    %184 = vector.extract_strided_slice %182 {offsets = [0, 0], sizes = [1, 64], strides = [1, 1]} : vector<1x96xf32> to vector<1x64xf32>
    %185 = arith.addf %183, %184 : vector<1x64xf32>
    %186 = arith.negf %185 : vector<1x64xf32>
    %187 = math.exp %186 : vector<1x64xf32>
    %cst_63 = arith.constant 1.000000e+00 : f32
    %188 = vector.broadcast %cst_63 : f32 to vector<1x64xf32>
    %189 = arith.addf %188, %187 : vector<1x64xf32>
    %190 = arith.divf %188, %189 : vector<1x64xf32>
    %191 = vector.extract_strided_slice %190 {offsets = [0, 0], sizes = [1, 32], strides = [1, 1]} : vector<1x64xf32> to vector<1x32xf32>
    %192 = vector.extract_strided_slice %190 {offsets = [0, 32], sizes = [1, 32], strides = [1, 1]} : vector<1x64xf32> to vector<1x32xf32>
    %193 = vector.extract_strided_slice %62 {offsets = [5, 64], sizes = [1, 32], strides = [1, 1]} : vector<8x96xf32> to vector<1x32xf32>
    %194 = vector.extract_strided_slice %182 {offsets = [0, 64], sizes = [1, 32], strides = [1, 1]} : vector<1x96xf32> to vector<1x32xf32>
    %195 = arith.mulf %191, %194 : vector<1x32xf32>
    %196 = arith.addf %193, %195 : vector<1x32xf32>
    %197 = math.tanh %196 : vector<1x32xf32>
    %cst_64 = arith.constant 1.000000e+00 : f32
    %198 = vector.broadcast %cst_64 : f32 to vector<1x32xf32>
    %199 = arith.subf %198, %192 : vector<1x32xf32>
    %200 = arith.mulf %199, %197 : vector<1x32xf32>
    %201 = arith.mulf %192, %179 : vector<1x32xf32>
    %202 = arith.addf %200, %201 : vector<1x32xf32>
    %c5_65 = arith.constant 5 : index
    %c64_66 = arith.constant 64 : index
    %203 = vector.load %arg5[%c5_65, %c64_66] : memref<8x96xf32, #tpu.memory_space<vmem>>, vector<1x32xf32>
    tpu.vector_store %arg5[%c5_65, %c64_66], %202 {strides = array<i32>} : memref<8x96xf32, #tpu.memory_space<vmem>>, vector<1x32xf32>,
    %cst_67 = arith.constant dense<0.000000e+00> : vector<1x96xf32>
    %204 = tpu.matmul %202, %63, %cst_67 {dimension_numbers = #tpu.dot_dimension_numbers<[1], [0], [0], [1], [0, 0, 1, 1], [], []>} : vector<1x32xf32>, vector<32x96xf32>, vector<1x96xf32> -> vector<1x96xf32>
    %205 = arith.addf %204, %64 : vector<1x96xf32>
    %206 = vector.extract_strided_slice %62 {offsets = [6, 0], sizes = [1, 64], strides = [1, 1]} : vector<8x96xf32> to vector<1x64xf32>
    %207 = vector.extract_strided_slice %205 {offsets = [0, 0], sizes = [1, 64], strides = [1, 1]} : vector<1x96xf32> to vector<1x64xf32>
    %208 = arith.addf %206, %207 : vector<1x64xf32>
    %209 = arith.negf %208 : vector<1x64xf32>
    %210 = math.exp %209 : vector<1x64xf32>
    %cst_68 = arith.constant 1.000000e+00 : f32
    %211 = vector.broadcast %cst_68 : f32 to vector<1x64xf32>
    %212 = arith.addf %211, %210 : vector<1x64xf32>
    %213 = arith.divf %211, %212 : vector<1x64xf32>
    %214 = vector.extract_strided_slice %213 {offsets = [0, 0], sizes = [1, 32], strides = [1, 1]} : vector<1x64xf32> to vector<1x32xf32>
    %215 = vector.extract_strided_slice %213 {offsets = [0, 32], sizes = [1, 32], strides = [1, 1]} : vector<1x64xf32> to vector<1x32xf32>
    %216 = vector.extract_strided_slice %62 {offsets = [6, 64], sizes = [1, 32], strides = [1, 1]} : vector<8x96xf32> to vector<1x32xf32>
    %217 = vector.extract_strided_slice %205 {offsets = [0, 64], sizes = [1, 32], strides = [1, 1]} : vector<1x96xf32> to vector<1x32xf32>
    %218 = arith.mulf %214, %217 : vector<1x32xf32>
    %219 = arith.addf %216, %218 : vector<1x32xf32>
    %220 = math.tanh %219 : vector<1x32xf32>
    %cst_69 = arith.constant 1.000000e+00 : f32
    %221 = vector.broadcast %cst_69 : f32 to vector<1x32xf32>
    %222 = arith.subf %221, %215 : vector<1x32xf32>
    %223 = arith.mulf %222, %220 : vector<1x32xf32>
    %224 = arith.mulf %215, %202 : vector<1x32xf32>
    %225 = arith.addf %223, %224 : vector<1x32xf32>
    %c6_70 = arith.constant 6 : index
    %c64_71 = arith.constant 64 : index
    %226 = vector.load %arg5[%c6_70, %c64_71] : memref<8x96xf32, #tpu.memory_space<vmem>>, vector<1x32xf32>
    tpu.vector_store %arg5[%c6_70, %c64_71], %225 {strides = array<i32>} : memref<8x96xf32, #tpu.memory_space<vmem>>, vector<1x32xf32>,
    %cst_72 = arith.constant dense<0.000000e+00> : vector<1x96xf32>
    %227 = tpu.matmul %225, %63, %cst_72 {dimension_numbers = #tpu.dot_dimension_numbers<[1], [0], [0], [1], [0, 0, 1, 1], [], []>} : vector<1x32xf32>, vector<32x96xf32>, vector<1x96xf32> -> vector<1x96xf32>
    %228 = arith.addf %227, %64 : vector<1x96xf32>
    %229 = vector.extract_strided_slice %62 {offsets = [7, 0], sizes = [1, 64], strides = [1, 1]} : vector<8x96xf32> to vector<1x64xf32>
    %230 = vector.extract_strided_slice %228 {offsets = [0, 0], sizes = [1, 64], strides = [1, 1]} : vector<1x96xf32> to vector<1x64xf32>
    %231 = arith.addf %229, %230 : vector<1x64xf32>
    %232 = arith.negf %231 : vector<1x64xf32>
    %233 = math.exp %232 : vector<1x64xf32>
    %cst_73 = arith.constant 1.000000e+00 : f32
    %234 = vector.broadcast %cst_73 : f32 to vector<1x64xf32>
    %235 = arith.addf %234, %233 : vector<1x64xf32>
    %236 = arith.divf %234, %235 : vector<1x64xf32>
    %237 = vector.extract_strided_slice %236 {offsets = [0, 0], sizes = [1, 32], strides = [1, 1]} : vector<1x64xf32> to vector<1x32xf32>
    %238 = vector.extract_strided_slice %236 {offsets = [0, 32], sizes = [1, 32], strides = [1, 1]} : vector<1x64xf32> to vector<1x32xf32>
    %239 = vector.extract_strided_slice %62 {offsets = [7, 64], sizes = [1, 32], strides = [1, 1]} : vector<8x96xf32> to vector<1x32xf32>
    %240 = vector.extract_strided_slice %228 {offsets = [0, 64], sizes = [1, 32], strides = [1, 1]} : vector<1x96xf32> to vector<1x32xf32>
    %241 = arith.mulf %237, %240 : vector<1x32xf32>
    %242 = arith.addf %239, %241 : vector<1x32xf32>
    %243 = math.tanh %242 : vector<1x32xf32>
    %cst_74 = arith.constant 1.000000e+00 : f32
    %244 = vector.broadcast %cst_74 : f32 to vector<1x32xf32>
    %245 = arith.subf %244, %238 : vector<1x32xf32>
    %246 = arith.mulf %245, %243 : vector<1x32xf32>
    %247 = arith.mulf %238, %225 : vector<1x32xf32>
    %248 = arith.addf %246, %247 : vector<1x32xf32>
    %c7_75 = arith.constant 7 : index
    %c64_76 = arith.constant 64 : index
    %249 = vector.load %arg5[%c7_75, %c64_76] : memref<8x96xf32, #tpu.memory_space<vmem>>, vector<1x32xf32>
    tpu.vector_store %arg5[%c7_75, %c64_76], %248 {strides = array<i32>} : memref<8x96xf32, #tpu.memory_space<vmem>>, vector<1x32xf32>,
    %c6_77 = arith.constant 6 : index
    %c0_78 = arith.constant 0 : index
    %c0_79 = arith.constant 0 : index
    %250 = vector.load %arg1[%c6_77, %c0_78, %c0_79] : memref<7x96x64xf32, #tpu.memory_space<vmem>>, vector<1x64x64xf32>
    %251 = vector.shape_cast %250 : vector<1x64x64xf32> to vector<64x64xf32>
    %c0_80 = arith.constant 0 : index
    %c0_81 = arith.constant 0 : index
    %252 = vector.load %arg5[%c0_80, %c0_81] : memref<8x96xf32, #tpu.memory_space<vmem>>, vector<8x96xf32>
    %c2_82 = arith.constant 2 : index
    %c0_83 = arith.constant 0 : index
    %c0_84 = arith.constant 0 : index
    %253 = vector.load %arg1[%c2_82, %c0_83, %c0_84] : memref<7x96x64xf32, #tpu.memory_space<vmem>>, vector<1x96x64xf32>
    %254 = vector.shape_cast %253 : vector<1x96x64xf32> to vector<96x64xf32>
    %cst_85 = arith.constant dense<0.000000e+00> : vector<8x64xf32>
    %255 = tpu.matmul %252, %254, %cst_85 {dimension_numbers = #tpu.dot_dimension_numbers<[1], [0], [0], [1], [0, 0, 1, 1], [], []>} : vector<8x96xf32>, vector<96x64xf32>, vector<8x64xf32> -> vector<8x64xf32>
    %c8 = arith.constant 8 : index
    %c0_86 = arith.constant 0 : index
    %256 = vector.load %arg3[%c8, %c0_86] : memref<15x96xf32, #tpu.memory_space<vmem>>, vector<1x64xf32>
    %257 = vector.broadcast %256 : vector<1x64xf32> to vector<8x64xf32>
    %258 = arith.addf %255, %257 : vector<8x64xf32>
    %c9 = arith.constant 9 : index
    %c0_87 = arith.constant 0 : index
    %259 = vector.load %arg3[%c9, %c0_87] : memref<15x96xf32, #tpu.memory_space<vmem>>, vector<1x64xf32>
    %c10 = arith.constant 10 : index
    %c0_88 = arith.constant 0 : index
    %260 = vector.load %arg3[%c10, %c0_88] : memref<15x96xf32, #tpu.memory_space<vmem>>, vector<1x64xf32>
    %cst_89 = arith.constant dense<0.000000e+00> : vector<8x64xf32>
    %261 = tpu.matmul %258, %251, %cst_89 {dimension_numbers = #tpu.dot_dimension_numbers<[1], [0], [0], [1], [0, 0, 1, 1], [], []>} : vector<8x64xf32>, vector<64x64xf32>, vector<8x64xf32> -> vector<8x64xf32>
    %262 = arith.mulf %258, %258 : vector<8x64xf32>
    %cst_90 = arith.constant dense<0.000000e+00> : vector<8x64xf32>
    %263 = tpu.matmul %262, %251, %cst_90 {dimension_numbers = #tpu.dot_dimension_numbers<[1], [0], [0], [1], [0, 0, 1, 1], [], []>} : vector<8x64xf32>, vector<64x64xf32>, vector<8x64xf32> -> vector<8x64xf32>
    %264 = arith.mulf %261, %261 : vector<8x64xf32>
    %265 = arith.subf %263, %264 : vector<8x64xf32>
    %266 = arith.subf %258, %261 : vector<8x64xf32>
    %cst_91 = arith.constant 9.99999974E-6 : f32
    %267 = vector.broadcast %cst_91 : f32 to vector<8x64xf32>
    %268 = arith.addf %265, %267 : vector<8x64xf32>
    %269 = math.rsqrt %268 : vector<8x64xf32>
    %270 = arith.mulf %266, %269 : vector<8x64xf32>
    %271 = vector.broadcast %259 : vector<1x64xf32> to vector<8x64xf32>
    %272 = arith.mulf %270, %271 : vector<8x64xf32>
    %273 = vector.broadcast %260 : vector<1x64xf32> to vector<8x64xf32>
    %274 = arith.addf %272, %273 : vector<8x64xf32>
    %cst_92 = arith.constant 0.000000e+00 : f32
    %275 = vector.broadcast %cst_92 : f32 to vector<8x64xf32>
    %276 = arith.cmpf ogt, %274, %275 : vector<8x64xf32>
    %cst_93 = arith.constant 0.00999999977 : f32
    %277 = vector.broadcast %cst_93 : f32 to vector<8x64xf32>
    %278 = arith.mulf %277, %274 : vector<8x64xf32>
    %279 = arith.select %276, %274, %278 : vector<8x64xi1>, vector<8x64xf32>
    %c3_94 = arith.constant 3 : index
    %c0_95 = arith.constant 0 : index
    %c0_96 = arith.constant 0 : index
    %280 = vector.load %arg1[%c3_94, %c0_95, %c0_96] : memref<7x96x64xf32, #tpu.memory_space<vmem>>, vector<1x64x64xf32>
    %281 = vector.shape_cast %280 : vector<1x64x64xf32> to vector<64x64xf32>
    %cst_97 = arith.constant dense<0.000000e+00> : vector<8x64xf32>
    %282 = tpu.matmul %279, %281, %cst_97 {dimension_numbers = #tpu.dot_dimension_numbers<[1], [0], [0], [1], [0, 0, 1, 1], [], []>} : vector<8x64xf32>, vector<64x64xf32>, vector<8x64xf32> -> vector<8x64xf32>
    %c11 = arith.constant 11 : index
    %c0_98 = arith.constant 0 : index
    %283 = vector.load %arg3[%c11, %c0_98] : memref<15x96xf32, #tpu.memory_space<vmem>>, vector<1x64xf32>
    %284 = vector.broadcast %283 : vector<1x64xf32> to vector<8x64xf32>
    %285 = arith.addf %282, %284 : vector<8x64xf32>
    %c12 = arith.constant 12 : index
    %c0_99 = arith.constant 0 : index
    %286 = vector.load %arg3[%c12, %c0_99] : memref<15x96xf32, #tpu.memory_space<vmem>>, vector<1x64xf32>
    %c13 = arith.constant 13 : index
    %c0_100 = arith.constant 0 : index
    %287 = vector.load %arg3[%c13, %c0_100] : memref<15x96xf32, #tpu.memory_space<vmem>>, vector<1x64xf32>
    %cst_101 = arith.constant dense<0.000000e+00> : vector<8x64xf32>
    %288 = tpu.matmul %285, %251, %cst_101 {dimension_numbers = #tpu.dot_dimension_numbers<[1], [0], [0], [1], [0, 0, 1, 1], [], []>} : vector<8x64xf32>, vector<64x64xf32>, vector<8x64xf32> -> vector<8x64xf32>
    %289 = arith.mulf %285, %285 : vector<8x64xf32>
    %cst_102 = arith.constant dense<0.000000e+00> : vector<8x64xf32>
    %290 = tpu.matmul %289, %251, %cst_102 {dimension_numbers = #tpu.dot_dimension_numbers<[1], [0], [0], [1], [0, 0, 1, 1], [], []>} : vector<8x64xf32>, vector<64x64xf32>, vector<8x64xf32> -> vector<8x64xf32>
    %291 = arith.mulf %288, %288 : vector<8x64xf32>
    %292 = arith.subf %290, %291 : vector<8x64xf32>
    %293 = arith.subf %285, %288 : vector<8x64xf32>
    %cst_103 = arith.constant 9.99999974E-6 : f32
    %294 = vector.broadcast %cst_103 : f32 to vector<8x64xf32>
    %295 = arith.addf %292, %294 : vector<8x64xf32>
    %296 = math.rsqrt %295 : vector<8x64xf32>
    %297 = arith.mulf %293, %296 : vector<8x64xf32>
    %298 = vector.broadcast %286 : vector<1x64xf32> to vector<8x64xf32>
    %299 = arith.mulf %297, %298 : vector<8x64xf32>
    %300 = vector.broadcast %287 : vector<1x64xf32> to vector<8x64xf32>
    %301 = arith.addf %299, %300 : vector<8x64xf32>
    %cst_104 = arith.constant 0.000000e+00 : f32
    %302 = vector.broadcast %cst_104 : f32 to vector<8x64xf32>
    %303 = arith.cmpf ogt, %301, %302 : vector<8x64xf32>
    %cst_105 = arith.constant 0.00999999977 : f32
    %304 = vector.broadcast %cst_105 : f32 to vector<8x64xf32>
    %305 = arith.mulf %304, %301 : vector<8x64xf32>
    %306 = arith.select %303, %301, %305 : vector<8x64xi1>, vector<8x64xf32>
    %c4_106 = arith.constant 4 : index
    %c0_107 = arith.constant 0 : index
    %c0_108 = arith.constant 0 : index
    %307 = vector.load %arg1[%c4_106, %c0_107, %c0_108] : memref<7x96x64xf32, #tpu.memory_space<vmem>>, vector<1x64x64xf32>
    %308 = vector.shape_cast %307 : vector<1x64x64xf32> to vector<64x64xf32>
    %cst_109 = arith.constant dense<0.000000e+00> : vector<8x64xf32>
    %309 = tpu.matmul %306, %308, %cst_109 {dimension_numbers = #tpu.dot_dimension_numbers<[1], [0], [0], [1], [0, 0, 1, 1], [], []>} : vector<8x64xf32>, vector<64x64xf32>, vector<8x64xf32> -> vector<8x64xf32>
    %c14 = arith.constant 14 : index
    %c0_110 = arith.constant 0 : index
    %310 = vector.load %arg3[%c14, %c0_110] : memref<15x96xf32, #tpu.memory_space<vmem>>, vector<1x64xf32>
    %311 = vector.broadcast %310 : vector<1x64xf32> to vector<8x64xf32>
    %312 = arith.addf %309, %311 : vector<8x64xf32>
    %313 = arith.negf %312 : vector<8x64xf32>
    %314 = math.exp %313 : vector<8x64xf32>
    %cst_111 = arith.constant 1.000000e+00 : f32
    %315 = vector.broadcast %cst_111 : f32 to vector<8x64xf32>
    %316 = arith.addf %315, %314 : vector<8x64xf32>
    %317 = arith.divf %315, %316 : vector<8x64xf32>
    %318 = vector.extract_strided_slice %317 {offsets = [0, 0], sizes = [8, 32], strides = [1, 1]} : vector<8x64xf32> to vector<8x32xf32>
    %319 = vector.extract_strided_slice %317 {offsets = [0, 32], sizes = [8, 32], strides = [1, 1]} : vector<8x64xf32> to vector<8x32xf32>
    %cst_112 = arith.constant 6.28318548 : f32
    %320 = vector.broadcast %cst_112 : f32 to vector<8x32xf32>
    %321 = arith.mulf %320, %319 : vector<8x32xf32>
    %322 = math.cos %321 : vector<8x32xf32>
    %323 = arith.mulf %318, %322 : vector<8x32xf32>
    %c0_113 = arith.constant 0 : index
    %c0_114 = arith.constant 0 : index
    %324 = vector.load %arg4[%c0_113, %c0_114] : memref<8x64xf32, #tpu.memory_space<vmem>>, vector<8x32xf32>
    tpu.vector_store %arg4[%c0_113, %c0_114], %323 {strides = array<i32>} : memref<8x64xf32, #tpu.memory_space<vmem>>, vector<8x32xf32>,
    %325 = math.sin %321 : vector<8x32xf32>
    %326 = arith.mulf %318, %325 : vector<8x32xf32>
    %c0_115 = arith.constant 0 : index
    %c32 = arith.constant 32 : index
    %327 = vector.load %arg4[%c0_115, %c32] : memref<8x64xf32, #tpu.memory_space<vmem>>, vector<8x32xf32>
    tpu.vector_store %arg4[%c0_115, %c32], %326 {strides = array<i32>} : memref<8x64xf32, #tpu.memory_space<vmem>>, vector<8x32xf32>,
    return
  }
}

</mosaic_0001>

<llo_original>
// kernel: tpu_custom_call.1
$region0: #{tpu_custom_call.1}
  #allocation0 [shape = 'u32[]', space=smem, size = 0x4, offset = 0x4, fixed_abs, tag = 'smem constant byte address 0x4 - core index']
  #allocation1 [shape = 'u32[144,128]{1,0:T(1,128)}', space=vmem, size = 0x12000, scoped, tag = 'internal scratch']
  #allocation2 [shape = 'f32[8,96]{1,0:T(8,128)}', space=vmem, size = 0x1000, scoped, tag = 'scratch operand']
  %s0 = inlined_call_operand.vmem [shape: f32[8,40], index: 0, kind: input, shape index: {}]
  %s1 = inlined_call_operand.vmem [shape: f32[7,96,64], index: 1, kind: input, shape index: {}]
  %s2 = inlined_call_operand.vmem [shape: f32[96,96], index: 2, kind: input, shape index: {}]
  %s3 = inlined_call_operand.vmem [shape: f32[15,96], index: 3, kind: input, shape index: {}]
  %s4 = inlined_call_operand.hbm [shape: f32[8,64], index: 4, kind: output, shape index: {}]
  %s5 = sld [smem:[#allocation0]]
  $region26: #{tpu_custom_call.1} parent=0
    _
  %s7 = ssub.s32 1, %s5
  %s8 = scalar_select 0, %s7, %s5
  $region1: #{tpu_custom_call.1} parent=0
    #allocation3 [shape = 'u8[4096]{0}', space=vmem, size = 0x1000, scoped, tag = 'output window, operand 0, single buffered']
    #allocation4 [shape = 's32[1]{0}', space=sflag, size = 0x4, scoped, tag = 'scoped memory for tpu_custom_call.1']
    %9 = vsyncpa [#allocation4], 0
    // Predicated region
    $region2: #{tpu_custom_call.1} parent=1 // pred_check
      _
    $region3: #{tpu_custom_call.1} parent=1 // pred_check_branch
      %11 = sbr.rel (0) target = $region5
    $region4: #{tpu_custom_call.1} parent=1 // pred_region
      _
    $region5: #{tpu_custom_call.1} parent=1 // pred_fallthru
      _
    // Predicated region
    $region6: #{tpu_custom_call.1} parent=1 // pred_check
      _
    $region7: #{tpu_custom_call.1} parent=1 // pred_check_branch
      %13 = sbr.rel (0) target = $region9
    $region8: #{tpu_custom_call.1} parent=1 // pred_region
      _
    $region9: #{tpu_custom_call.1} parent=1 // pred_fallthru
      _
    // Predicated region
    $region10: #{tpu_custom_call.1} parent=1 // pred_check
      _
    $region11: #{tpu_custom_call.1} parent=1 // pred_check_branch
      %15 = sbr.rel (0) target = $region13
    $region12: #{tpu_custom_call.1} parent=1 // pred_region
      _
    $region13: #{tpu_custom_call.1} parent=1 // pred_fallthru
      _
    // Predicated region
    $region14: #{tpu_custom_call.1} parent=1 // pred_check
      _
    $region15: #{tpu_custom_call.1} parent=1 // pred_check_branch
      %17 = sbr.rel (0) target = $region17
    $region16: #{tpu_custom_call.1} parent=1 // pred_region
      _
    $region17: #{tpu_custom_call.1} parent=1 // pred_fallthru
      _
    %s18 = scalar_lea.vmem %s1, 480
    %v19 = vld [vmem:[%s18] sm:$0xff]
    %v20 = vld [vmem:[%s18 + $0x8] sm:$0xff]
    %v21 = vld [vmem:[%s18 + $0x10] sm:$0xff]
    %v22 = vld [vmem:[%s18 + $0x18] sm:$0xff]
    %v23 = vld [vmem:[%s18 + $0x20] sm:$0xff]
    %v24 = vld [vmem:[%s18 + $0x28] sm:$0xff]
    %v25 = vld [vmem:[%s18 + $0x30] sm:$0xff]
    %v26 = vld [vmem:[%s18 + $0x38] sm:$0xff]
    %v27 = vld [vmem:[%s0] sm:$0xff]
    %v28 = vld [vmem:[%s1] sm:$0xff]
    %v29 = vld [vmem:[%s1 + $0x8] sm:$0xff]
    %v30 = vld [vmem:[%s1 + $0x10] sm:$0xff]
    %v31 = vld [vmem:[%s1 + $0x18] sm:$0xff]
    %v32 = vld [vmem:[%s1 + $0x20] sm:$0xff]
    %v33 = vld [vmem:[%s3] sm:$0x1]
    %v34 = vlaneseq
    %v35 = vshrl.u32 %v34, 7
    %v36 = vsub.s32 0, %v35
    %v37 = vrot.slane %v33, %v36
    %vm38 = vcmask 326656
    %v40 = vsel %vm38, %v27, 0
    %42 = vmatprep.subr.mxu0 0.0
    %43 = vmatpush1.msra.mxu0 %v28
    %44 = vmatprep.subr.mxu0 0.0
    %45 = vmatpush1.msra.mxu0 %v29
    %46 = vmatprep.subr.mxu0 0.0
    %47 = vmatpush1.msra.mxu0 %v30
    %48 = vmatprep.subr.mxu0 0.0
    %49 = vmatpush1.msra.mxu0 %v31
    %50 = vmatprep.subr.mxu0 0.0
    %51 = vmatpush1.msra.mxu0 %v32
    %52 = vmatprep.subr.mxu0 0.0
    %53 = vmatpush1.msra.mxu0 0.0
    %54 = vmatprep.subr.mxu0 0.0
    %55 = vmatpush1.msra.mxu0 0.0
    %56 = vmatprep.subr.mxu0 0.0
    %57 = vmatpush1.msra.mxu0 0.0
    %58 = vmatprep.subr.mxu0 0.0
    %59 = vmatpush1.msra.mxu0 0.0
    %60 = vmatprep.subr.mxu0 0.0
    %61 = vmatpush1.msra.mxu0 0.0
    %62 = vmatprep.subr.mxu0 0.0
    %63 = vmatpush1.msra.mxu0 0.0
    %64 = vmatprep.subr.mxu0 0.0
    %65 = vmatpush1.msra.mxu0 0.0
    %66 = vmatprep.subr.mxu0 0.0
    %67 = vmatpush1.msra.mxu0 0.0
    %68 = vmatprep.subr.mxu0 0.0
    %69 = vmatpush1.msra.mxu0 0.0
    %70 = vmatprep.subr.mxu0 0.0
    %71 = vmatpush1.msra.mxu0 0.0
    %72 = vmatprep.subr.mxu0 0.0
    %73 = vmatpush1.msra.mxu0 0.0
    %74 = vmatprep.subr.mxu0 0.0
    %75 = vmatpush1.msra.mxu0 0.0
    %76 = vmatprep.subr.mxu0 0.0
    %77 = vmatpush1.msra.mxu0 0.0
    %78 = vmatprep.subr.mxu0 0.0
    %79 = vmatpush1.msra.mxu0 0.0
    %80 = vmatprep.subr.mxu0 0.0
    %81 = vmatpush1.msra.mxu0 0.0
    %82 = vmatprep.subr.mxu0 0.0
    %83 = vmatpush1.msra.mxu0 0.0
    %84 = vmatprep.subr.mxu0 0.0
    %85 = vmatpush1.msra.mxu0 0.0
    %86 = vmatprep.subr.mxu0 0.0
    %87 = vmatpush1.msra.mxu0 0.0
    %88 = vmatprep.subr.mxu0 0.0
    %89 = vmatpush1.msra.mxu0 0.0
    %90 = vmatprep.subr.mxu0 0.0
    %91 = vmatpush1.msra.mxu0 0.0
    %92 = vmatprep.subr.mxu0 0.0
    %93 = vmatpush1.msra.mxu0 0.0
    %94 = vmatprep.subr.mxu0 0.0
    %95 = vmatpush1.msra.mxu0 0.0
    %96 = vmatprep.subr.mxu0 0.0
    %97 = vmatpush1.msra.mxu0 0.0
    %98 = vmatprep.subr.mxu0 0.0
    %99 = vmatpush1.msra.mxu0 0.0
    %100 = vmatprep.subr.mxu0 0.0
    %101 = vmatpush1.msra.mxu0 0.0
    %102 = vmatprep.subr.mxu0 0.0
    %103 = vmatpush1.msra.mxu0 0.0
    %104 = vmatprep.subr.mxu0 0.0
    %105 = vmatpush1.msra.mxu0 0.0
    %106 = vmatprep.mubr.f32.mxu0 0.0
    %107 = vmatmul.mubr.f32.gmra.mrb[0].mxu0 %v40
    %v108 = vpop.f32.mrb[0].mxu0
    %v109 = vadd.f32 %v37, %v108
    %v110 = vpop.f32.mrb[0].mxu0
    %111 = vdwg.mxu0
    %v112 = vld [vmem:[%s3 + $0x1] sm:$0x1]
    %v113 = vld [vmem:[%s3 + $0x2] sm:$0x1]
    %vm114 = vcmask 523264
    %v116 = vsel %vm114, %v109, 0
    %118 = vmatprep.subr.mxu0 0.0
    %119 = vmatpush1.msra.mxu0 %v19
    %120 = vmatprep.subr.mxu0 0.0
    %121 = vmatpush1.msra.mxu0 %v20
    %122 = vmatprep.subr.mxu0 0.0
    %123 = vmatpush1.msra.mxu0 %v21
    %124 = vmatprep.subr.mxu0 0.0
    %125 = vmatpush1.msra.mxu0 %v22
    %126 = vmatprep.subr.mxu0 0.0
    %127 = vmatpush1.msra.mxu0 %v23
    %128 = vmatprep.subr.mxu0 0.0
    %129 = vmatpush1.msra.mxu0 %v24
    %130 = vmatprep.subr.mxu0 0.0
    %131 = vmatpush1.msra.mxu0 %v25
    %132 = vmatprep.subr.mxu0 0.0
    %133 = vmatpush1.msra.mxu0 %v26
    %134 = vmatprep.subr.mxu0 0.0
    %135 = vmatpush1.msra.mxu0 0.0
    %136 = vmatprep.subr.mxu0 0.0
    %137 = vmatpush1.msra.mxu0 0.0
    %138 = vmatprep.subr.mxu0 0.0
    %139 = vmatpush1.msra.mxu0 0.0
    %140 = vmatprep.subr.mxu0 0.0
    %141 = vmatpush1.msra.mxu0 0.0
    %142 = vmatprep.subr.mxu0 0.0
    %143 = vmatpush1.msra.mxu0 0.0
    %144 = vmatprep.subr.mxu0 0.0
    %145 = vmatpush1.msra.mxu0 0.0
    %146 = vmatprep.subr.mxu0 0.0
    %147 = vmatpush1.msra.mxu0 0.0
    %148 = vmatprep.subr.mxu0 0.0
    %149 = vmatpush1.msra.mxu0 0.0
    %150 = vmatprep.subr.mxu0 0.0
    %151 = vmatpush1.msra.mxu0 0.0
    %152 = vmatprep.subr.mxu0 0.0
    %153 = vmatpush1.msra.mxu0 0.0
    %154 = vmatprep.subr.mxu0 0.0
    %155 = vmatpush1.msra.mxu0 0.0
    %156 = vmatprep.subr.mxu0 0.0
    %157 = vmatpush1.msra.mxu0 0.0
    %158 = vmatprep.subr.mxu0 0.0
    %159 = vmatpush1.msra.mxu0 0.0
    %160 = vmatprep.subr.mxu0 0.0
    %161 = vmatpush1.msra.mxu0 0.0
    %162 = vmatprep.subr.mxu0 0.0
    %163 = vmatpush1.msra.mxu0 0.0
    %164 = vmatprep.subr.mxu0 0.0
    %165 = vmatpush1.msra.mxu0 0.0
    %166 = vmatprep.subr.mxu0 0.0
    %167 = vmatpush1.msra.mxu0 0.0
    %168 = vmatprep.subr.mxu0 0.0
    %169 = vmatpush1.msra.mxu0 0.0
    %170 = vmatprep.subr.mxu0 0.0
    %171 = vmatpush1.msra.mxu0 0.0
    %172 = vmatprep.subr.mxu0 0.0
    %173 = vmatpush1.msra.mxu0 0.0
    %174 = vmatprep.subr.mxu0 0.0
    %175 = vmatpush1.msra.mxu0 0.0
    %176 = vmatprep.subr.mxu0 0.0
    %177 = vmatpush1.msra.mxu0 0.0
    %178 = vmatprep.subr.mxu0 0.0
    %179 = vmatpush1.msra.mxu0 0.0
    %180 = vmatprep.subr.mxu0 0.0
    %181 = vmatpush1.msra.mxu0 0.0
    %182 = vmatprep.mubr.f32.mxu0 0.0
    %183 = vmatmul.mubr.f32.gmra.mrb[0].mxu0 %v116
    %v184 = vpop.f32.mrb[0].mxu0
    %v185 = vadd.f32 0.0, %v184
    %v186 = vpop.f32.mrb[0].mxu0
    %187 = vdwg.mxu0
    %v188 = vmul.f32 %v109, %v109
    %v190 = vsel %vm114, %v188, 0
    %192 = vmatprep.subr.mxu0 0.0
    %193 = vmatpush1.msra.mxu0 %v19
    %194 = vmatprep.subr.mxu0 0.0
    %195 = vmatpush1.msra.mxu0 %v20
    %196 = vmatprep.subr.mxu0 0.0
    %197 = vmatpush1.msra.mxu0 %v21
    %198 = vmatprep.subr.mxu0 0.0
    %199 = vmatpush1.msra.mxu0 %v22
    %200 = vmatprep.subr.mxu0 0.0
    %201 = vmatpush1.msra.mxu0 %v23
    %202 = vmatprep.subr.mxu0 0.0
    %203 = vmatpush1.msra.mxu0 %v24
    %204 = vmatprep.subr.mxu0 0.0
    %205 = vmatpush1.msra.mxu0 %v25
    %206 = vmatprep.subr.mxu0 0.0
    %207 = vmatpush1.msra.mxu0 %v26
    %208 = vmatprep.subr.mxu0 0.0
    %209 = vmatpush1.msra.mxu0 0.0
    %210 = vmatprep.subr.mxu0 0.0
    %211 = vmatpush1.msra.mxu0 0.0
    %212 = vmatprep.subr.mxu0 0.0
    %213 = vmatpush1.msra.mxu0 0.0
    %214 = vmatprep.subr.mxu0 0.0
    %215 = vmatpush1.msra.mxu0 0.0
    %216 = vmatprep.subr.mxu0 0.0
    %217 = vmatpush1.msra.mxu0 0.0
    %218 = vmatprep.subr.mxu0 0.0
    %219 = vmatpush1.msra.mxu0 0.0
    %220 = vmatprep.subr.mxu0 0.0
    %221 = vmatpush1.msra.mxu0 0.0
    %222 = vmatprep.subr.mxu0 0.0
    %223 = vmatpush1.msra.mxu0 0.0
    %224 = vmatprep.subr.mxu0 0.0
    %225 = vmatpush1.msra.mxu0 0.0
    %226 = vmatprep.subr.mxu0 0.0
    %227 = vmatpush1.msra.mxu0 0.0
    %228 = vmatprep.subr.mxu0 0.0
    %229 = vmatpush1.msra.mxu0 0.0
    %230 = vmatprep.subr.mxu0 0.0
    %231 = vmatpush1.msra.mxu0 0.0
    %232 = vmatprep.subr.mxu0 0.0
    %233 = vmatpush1.msra.mxu0 0.0
    %234 = vmatprep.subr.mxu0 0.0
    %235 = vmatpush1.msra.mxu0 0.0
    %236 = vmatprep.subr.mxu0 0.0
    %237 = vmatpush1.msra.mxu0 0.0
    %238 = vmatprep.subr.mxu0 0.0
    %239 = vmatpush1.msra.mxu0 0.0
    %240 = vmatprep.subr.mxu0 0.0
    %241 = vmatpush1.msra.mxu0 0.0
    %242 = vmatprep.subr.mxu0 0.0
    %243 = vmatpush1.msra.mxu0 0.0
    %244 = vmatprep.subr.mxu0 0.0
    %245 = vmatpush1.msra.mxu0 0.0
    %246 = vmatprep.subr.mxu0 0.0
    %247 = vmatpush1.msra.mxu0 0.0
    %248 = vmatprep.subr.mxu0 0.0
    %249 = vmatpush1.msra.mxu0 0.0
    %250 = vmatprep.subr.mxu0 0.0
    %251 = vmatpush1.msra.mxu0 0.0
    %252 = vmatprep.subr.mxu0 0.0
    %253 = vmatpush1.msra.mxu0 0.0
    %254 = vmatprep.subr.mxu0 0.0
    %255 = vmatpush1.msra.mxu0 0.0
    %256 = vmatprep.mubr.f32.mxu0 0.0
    %257 = vmatmul.mubr.f32.gmra.mrb[0].mxu0 %v190
    %v258 = vpop.f32.mrb[0].mxu0
    %v259 = vadd.f32 0.0, %v258
    %v260 = vpop.f32.mrb[0].mxu0
    %261 = vdwg.mxu0
    %v262 = vmul.f32 %v185, %v185
    %v263 = vsub.f32 %v259, %v262
    %v264 = vsub.f32 %v109, %v185
    %v265 = vadd.f32 %v263, 1e-05
    %v266 = vrsqrt.pop %v265
    %v267 = vmul.f32 %v264, %v266
    %v268 = vlaneseq
    %v269 = vshrl.u32 %v268, 7
    %v270 = vsub.s32 0, %v269
    %v271 = vrot.slane %v112, %v270
    %v272 = vmul.f32 %v267, %v271
    %v273 = vlaneseq
    %v274 = vshrl.u32 %v273, 7
    %v275 = vsub.s32 0, %v274
    %v276 = vrot.slane %v113, %v275
    %v277 = vadd.f32 %v272, %v276
    %vm278 = vcmp.gt.f32.partialorder %v277, 0.0
    %v279 = vmul.f32 %v277, 0.01
    %v280 = vsel %vm278, %v277, %v279
    %s281 = scalar_lea.vmem %s1, 96
    %v282 = vld [vmem:[%s281] sm:$0xff]
    %v283 = vld [vmem:[%s281 + $0x8] sm:$0xff]
    %v284 = vld [vmem:[%s281 + $0x10] sm:$0xff]
    %v285 = vld [vmem:[%s281 + $0x18] sm:$0xff]
    %v286 = vld [vmem:[%s281 + $0x20] sm:$0xff]
    %v287 = vld [vmem:[%s281 + $0x28] sm:$0xff]
    %v288 = vld [vmem:[%s281 + $0x30] sm:$0xff]
    %v289 = vld [vmem:[%s281 + $0x38] sm:$0xff]
    %v290 = vld [vmem:[%s3 + $0x3] sm:$0x1]
    %v291 = vlaneseq
    %v292 = vshrl.u32 %v291, 7
    %v293 = vsub.s32 0, %v292
    %v294 = vrot.slane %v290, %v293
    %v296 = vsel %vm114, %v280, 0
    %298 = vmatprep.subr.mxu0 0.0
    %299 = vmatpush1.msra.mxu0 %v282
    %300 = vmatprep.subr.mxu0 0.0
    %301 = vmatpush1.msra.mxu0 %v283
    %302 = vmatprep.subr.mxu0 0.0
    %303 = vmatpush1.msra.mxu0 %v284
    %304 = vmatprep.subr.mxu0 0.0
    %305 = vmatpush1.msra.mxu0 %v285
    %306 = vmatprep.subr.mxu0 0.0
    %307 = vmatpush1.msra.mxu0 %v286
    %308 = vmatprep.subr.mxu0 0.0
    %309 = vmatpush1.msra.mxu0 %v287
    %310 = vmatprep.subr.mxu0 0.0
    %311 = vmatpush1.msra.mxu0 %v288
    %312 = vmatprep.subr.mxu0 0.0
    %313 = vmatpush1.msra.mxu0 %v289
    %314 = vmatprep.subr.mxu0 0.0
    %315 = vmatpush1.msra.mxu0 0.0
    %316 = vmatprep.subr.mxu0 0.0
    %317 = vmatpush1.msra.mxu0 0.0
    %318 = vmatprep.subr.mxu0 0.0
    %319 = vmatpush1.msra.mxu0 0.0
    %320 = vmatprep.subr.mxu0 0.0
    %321 = vmatpush1.msra.mxu0 0.0
    %322 = vmatprep.subr.mxu0 0.0
    %323 = vmatpush1.msra.mxu0 0.0
    %324 = vmatprep.subr.mxu0 0.0
    %325 = vmatpush1.msra.mxu0 0.0
    %326 = vmatprep.subr.mxu0 0.0
    %327 = vmatpush1.msra.mxu0 0.0
    %328 = vmatprep.subr.mxu0 0.0
    %329 = vmatpush1.msra.mxu0 0.0
    %330 = vmatprep.subr.mxu0 0.0
    %331 = vmatpush1.msra.mxu0 0.0
    %332 = vmatprep.subr.mxu0 0.0
    %333 = vmatpush1.msra.mxu0 0.0
    %334 = vmatprep.subr.mxu0 0.0
    %335 = vmatpush1.msra.mxu0 0.0
    %336 = vmatprep.subr.mxu0 0.0
    %337 = vmatpush1.msra.mxu0 0.0
    %338 = vmatprep.subr.mxu0 0.0
    %339 = vmatpush1.msra.mxu0 0.0
    %340 = vmatprep.subr.mxu0 0.0
    %341 = vmatpush1.msra.mxu0 0.0
    %342 = vmatprep.subr.mxu0 0.0
    %343 = vmatpush1.msra.mxu0 0.0
    %344 = vmatprep.subr.mxu0 0.0
    %345 = vmatpush1.msra.mxu0 0.0
    %346 = vmatprep.subr.mxu0 0.0
    %347 = vmatpush1.msra.mxu0 0.0
    %348 = vmatprep.subr.mxu0 0.0
    %349 = vmatpush1.msra.mxu0 0.0
    %350 = vmatprep.subr.mxu0 0.0
    %351 = vmatpush1.msra.mxu0 0.0
    %352 = vmatprep.subr.mxu0 0.0
    %353 = vmatpush1.msra.mxu0 0.0
    %354 = vmatprep.subr.mxu0 0.0
    %355 = vmatpush1.msra.mxu0 0.0
    %356 = vmatprep.subr.mxu0 0.0
    %357 = vmatpush1.msra.mxu0 0.0
    %358 = vmatprep.subr.mxu0 0.0
    %359 = vmatpush1.msra.mxu0 0.0
    %360 = vmatprep.subr.mxu0 0.0
    %361 = vmatpush1.msra.mxu0 0.0
    %362 = vmatprep.mubr.f32.mxu0 0.0
    %363 = vmatmul.mubr.f32.gmra.mrb[0].mxu0 %v296
    %v364 = vpop.f32.mrb[0].mxu0
    %v365 = vadd.f32 %v294, %v364
    %v366 = vpop.f32.mrb[0].mxu0
    %367 = vdwg.mxu0
    %v368 = vld [vmem:[%s3 + $0x4] sm:$0x1]
    %v369 = vld [vmem:[%s3 + $0x5] sm:$0x1]
    %v371 = vsel %vm114, %v365, 0
    %373 = vmatprep.subr.mxu0 0.0
    %374 = vmatpush1.msra.mxu0 %v19
    %375 = vmatprep.subr.mxu0 0.0
    %376 = vmatpush1.msra.mxu0 %v20
    %377 = vmatprep.subr.mxu0 0.0
    %378 = vmatpush1.msra.mxu0 %v21
    %379 = vmatprep.subr.mxu0 0.0
    %380 = vmatpush1.msra.mxu0 %v22
    %381 = vmatprep.subr.mxu0 0.0
    %382 = vmatpush1.msra.mxu0 %v23
    %383 = vmatprep.subr.mxu0 0.0
    %384 = vmatpush1.msra.mxu0 %v24
    %385 = vmatprep.subr.mxu0 0.0
    %386 = vmatpush1.msra.mxu0 %v25
    %387 = vmatprep.subr.mxu0 0.0
    %388 = vmatpush1.msra.mxu0 %v26
    %389 = vmatprep.subr.mxu0 0.0
    %390 = vmatpush1.msra.mxu0 0.0
    %391 = vmatprep.subr.mxu0 0.0
    %392 = vmatpush1.msra.mxu0 0.0
    %393 = vmatprep.subr.mxu0 0.0
    %394 = vmatpush1.msra.mxu0 0.0
    %395 = vmatprep.subr.mxu0 0.0
    %396 = vmatpush1.msra.mxu0 0.0
    %397 = vmatprep.subr.mxu0 0.0
    %398 = vmatpush1.msra.mxu0 0.0
    %399 = vmatprep.subr.mxu0 0.0
    %400 = vmatpush1.msra.mxu0 0.0
    %401 = vmatprep.subr.mxu0 0.0
    %402 = vmatpush1.msra.mxu0 0.0
    %403 = vmatprep.subr.mxu0 0.0
    %404 = vmatpush1.msra.mxu0 0.0
    %405 = vmatprep.subr.mxu0 0.0
    %406 = vmatpush1.msra.mxu0 0.0
    %407 = vmatprep.subr.mxu0 0.0
    %408 = vmatpush1.msra.mxu0 0.0
    %409 = vmatprep.subr.mxu0 0.0
    %410 = vmatpush1.msra.mxu0 0.0
    %411 = vmatprep.subr.mxu0 0.0
    %412 = vmatpush1.msra.mxu0 0.0
    %413 = vmatprep.subr.mxu0 0.0
    %414 = vmatpush1.msra.mxu0 0.0
    %415 = vmatprep.subr.mxu0 0.0
    %416 = vmatpush1.msra.mxu0 0.0
    %417 = vmatprep.subr.mxu0 0.0
    %418 = vmatpush1.msra.mxu0 0.0
    %419 = vmatprep.subr.mxu0 0.0
    %420 = vmatpush1.msra.mxu0 0.0
    %421 = vmatprep.subr.mxu0 0.0
    %422 = vmatpush1.msra.mxu0 0.0
    %423 = vmatprep.subr.mxu0 0.0
    %424 = vmatpush1.msra.mxu0 0.0
    %425 = vmatprep.subr.mxu0 0.0
    %426 = vmatpush1.msra.mxu0 0.0
    %427 = vmatprep.subr.mxu0 0.0
    %428 = vmatpush1.msra.mxu0 0.0
    %429 = vmatprep.subr.mxu0 0.0
    %430 = vmatpush1.msra.mxu0 0.0
    %431 = vmatprep.subr.mxu0 0.0
    %432 = vmatpush1.msra.mxu0 0.0
    %433 = vmatprep.subr.mxu0 0.0
    %434 = vmatpush1.msra.mxu0 0.0
    %435 = vmatprep.subr.mxu0 0.0
    %436 = vmatpush1.msra.mxu0 0.0
    %437 = vmatprep.mubr.f32.mxu0 0.0
    %438 = vmatmul.mubr.f32.gmra.mrb[0].mxu0 %v371
    %v439 = vpop.f32.mrb[0].mxu0
    %v440 = vadd.f32 0.0, %v439
    %v441 = vpop.f32.mrb[0].mxu0
    %442 = vdwg.mxu0
    %v443 = vmul.f32 %v365, %v365
    %v445 = vsel %vm114, %v443, 0
    %447 = vmatprep.subr.mxu0 0.0
    %448 = vmatpush1.msra.mxu0 %v19
    %449 = vmatprep.subr.mxu0 0.0
    %450 = vmatpush1.msra.mxu0 %v20
    %451 = vmatprep.subr.mxu0 0.0
    %452 = vmatpush1.msra.mxu0 %v21
    %453 = vmatprep.subr.mxu0 0.0
    %454 = vmatpush1.msra.mxu0 %v22
    %455 = vmatprep.subr.mxu0 0.0
    %456 = vmatpush1.msra.mxu0 %v23
    %457 = vmatprep.subr.mxu0 0.0
    %458 = vmatpush1.msra.mxu0 %v24
    %459 = vmatprep.subr.mxu0 0.0
    %460 = vmatpush1.msra.mxu0 %v25
    %461 = vmatprep.subr.mxu0 0.0
    %462 = vmatpush1.msra.mxu0 %v26
    %463 = vmatprep.subr.mxu0 0.0
    %464 = vmatpush1.msra.mxu0 0.0
    %465 = vmatprep.subr.mxu0 0.0
    %466 = vmatpush1.msra.mxu0 0.0
    %467 = vmatprep.subr.mxu0 0.0
    %468 = vmatpush1.msra.mxu0 0.0
    %469 = vmatprep.subr.mxu0 0.0
    %470 = vmatpush1.msra.mxu0 0.0
    %471 = vmatprep.subr.mxu0 0.0
    %472 = vmatpush1.msra.mxu0 0.0
    %473 = vmatprep.subr.mxu0 0.0
    %474 = vmatpush1.msra.mxu0 0.0
    %475 = vmatprep.subr.mxu0 0.0
    %476 = vmatpush1.msra.mxu0 0.0
    %477 = vmatprep.subr.mxu0 0.0
    %478 = vmatpush1.msra.mxu0 0.0
    %479 = vmatprep.subr.mxu0 0.0
    %480 = vmatpush1.msra.mxu0 0.0
    %481 = vmatprep.subr.mxu0 0.0
    %482 = vmatpush1.msra.mxu0 0.0
    %483 = vmatprep.subr.mxu0 0.0
    %484 = vmatpush1.msra.mxu0 0.0
    %485 = vmatprep.subr.mxu0 0.0
    %486 = vmatpush1.msra.mxu0 0.0
    %487 = vmatprep.subr.mxu0 0.0
    %488 = vmatpush1.msra.mxu0 0.0
    %489 = vmatprep.subr.mxu0 0.0
    %490 = vmatpush1.msra.mxu0 0.0
    %491 = vmatprep.subr.mxu0 0.0
    %492 = vmatpush1.msra.mxu0 0.0
    %493 = vmatprep.subr.mxu0 0.0
    %494 = vmatpush1.msra.mxu0 0.0
    %495 = vmatprep.subr.mxu0 0.0
    %496 = vmatpush1.msra.mxu0 0.0
    %497 = vmatprep.subr.mxu0 0.0
    %498 = vmatpush1.msra.mxu0 0.0
    %499 = vmatprep.subr.mxu0 0.0
    %500 = vmatpush1.msra.mxu0 0.0
    %501 = vmatprep.subr.mxu0 0.0
    %502 = vmatpush1.msra.mxu0 0.0
    %503 = vmatprep.subr.mxu0 0.0
    %504 = vmatpush1.msra.mxu0 0.0
    %505 = vmatprep.subr.mxu0 0.0
    %506 = vmatpush1.msra.mxu0 0.0
    %507 = vmatprep.subr.mxu0 0.0
    %508 = vmatpush1.msra.mxu0 0.0
    %509 = vmatprep.subr.mxu0 0.0
    %510 = vmatpush1.msra.mxu0 0.0
    %511 = vmatprep.mubr.f32.mxu0 0.0
    %512 = vmatmul.mubr.f32.gmra.mrb[0].mxu0 %v445
    %v513 = vpop.f32.mrb[0].mxu0
    %v514 = vadd.f32 0.0, %v513
    %v515 = vpop.f32.mrb[0].mxu0
    %516 = vdwg.mxu0
    %v517 = vmul.f32 %v440, %v440
    %v518 = vsub.f32 %v514, %v517
    %v519 = vsub.f32 %v365, %v440
    %v520 = vadd.f32 %v518, 1e-05
    %v521 = vrsqrt.pop %v520
    %v522 = vmul.f32 %v519, %v521
    %v523 = vlaneseq
    %v524 = vshrl.u32 %v523, 7
    %v525 = vsub.s32 0, %v524
    %v526 = vrot.slane %v368, %v525
    %v527 = vmul.f32 %v522, %v526
    %v528 = vlaneseq
    %v529 = vshrl.u32 %v528, 7
    %v530 = vsub.s32 0, %v529
    %v531 = vrot.slane %v369, %v530
    %v532 = vadd.f32 %v527, %v531
    %vm533 = vcmp.gt.f32.partialorder %v532, 0.0
    %v534 = vmul.f32 %v532, 0.01
    %v535 = vsel %vm533, %v532, %v534
    %536 = vst.msk [vmem:[#allocation2] sm:$0xff] %vm114, %v535
    %v537 = vld [vmem:[%s2] sm:$0xff]
    %v538 = vld [vmem:[%s2 + $0x8] sm:$0xff]
    %v539 = vld [vmem:[%s2 + $0x10] sm:$0xff]
    %v540 = vld [vmem:[%s2 + $0x18] sm:$0xff]
    %v541 = vld [vmem:[%s2 + $0x20] sm:$0xff]
    %v542 = vld [vmem:[%s2 + $0x28] sm:$0xff]
    %v543 = vld [vmem:[%s2 + $0x30] sm:$0xff]
    %v544 = vld [vmem:[%s2 + $0x38] sm:$0xff]
    %v545 = vld [vmem:[%s3 + $0x6] sm:$0x1]
    %v546 = vlaneseq
    %v547 = vshrl.u32 %v546, 7
    %v548 = vsub.s32 0, %v547
    %v549 = vrot.slane %v545, %v548
    %v551 = vsel %vm114, %v535, 0
    %553 = vmatprep.subr.mxu0 0.0
    %554 = vmatpush1.msra.mxu0 %v537
    %555 = vmatprep.subr.mxu0 0.0
    %556 = vmatpush1.msra.mxu0 %v538
    %557 = vmatprep.subr.mxu0 0.0
    %558 = vmatpush1.msra.mxu0 %v539
    %559 = vmatprep.subr.mxu0 0.0
    %560 = vmatpush1.msra.mxu0 %v540
    %561 = vmatprep.subr.mxu0 0.0
    %562 = vmatpush1.msra.mxu0 %v541
    %563 = vmatprep.subr.mxu0 0.0
    %564 = vmatpush1.msra.mxu0 %v542
    %565 = vmatprep.subr.mxu0 0.0
    %566 = vmatpush1.msra.mxu0 %v543
    %567 = vmatprep.subr.mxu0 0.0
    %568 = vmatpush1.msra.mxu0 %v544
    %569 = vmatprep.subr.mxu0 0.0
    %570 = vmatpush1.msra.mxu0 0.0
    %571 = vmatprep.subr.mxu0 0.0
    %572 = vmatpush1.msra.mxu0 0.0
    %573 = vmatprep.subr.mxu0 0.0
    %574 = vmatpush1.msra.mxu0 0.0
    %575 = vmatprep.subr.mxu0 0.0
    %576 = vmatpush1.msra.mxu0 0.0
    %577 = vmatprep.subr.mxu0 0.0
    %578 = vmatpush1.msra.mxu0 0.0
    %579 = vmatprep.subr.mxu0 0.0
    %580 = vmatpush1.msra.mxu0 0.0
    %581 = vmatprep.subr.mxu0 0.0
    %582 = vmatpush1.msra.mxu0 0.0
    %583 = vmatprep.subr.mxu0 0.0
    %584 = vmatpush1.msra.mxu0 0.0
    %585 = vmatprep.subr.mxu0 0.0
    %586 = vmatpush1.msra.mxu0 0.0
    %587 = vmatprep.subr.mxu0 0.0
    %588 = vmatpush1.msra.mxu0 0.0
    %589 = vmatprep.subr.mxu0 0.0
    %590 = vmatpush1.msra.mxu0 0.0
    %591 = vmatprep.subr.mxu0 0.0
    %592 = vmatpush1.msra.mxu0 0.0
    %593 = vmatprep.subr.mxu0 0.0
    %594 = vmatpush1.msra.mxu0 0.0
    %595 = vmatprep.subr.mxu0 0.0
    %596 = vmatpush1.msra.mxu0 0.0
    %597 = vmatprep.subr.mxu0 0.0
    %598 = vmatpush1.msra.mxu0 0.0
    %599 = vmatprep.subr.mxu0 0.0
    %600 = vmatpush1.msra.mxu0 0.0
    %601 = vmatprep.subr.mxu0 0.0
    %602 = vmatpush1.msra.mxu0 0.0
    %603 = vmatprep.subr.mxu0 0.0
    %604 = vmatpush1.msra.mxu0 0.0
    %605 = vmatprep.subr.mxu0 0.0
    %606 = vmatpush1.msra.mxu0 0.0
    %607 = vmatprep.subr.mxu0 0.0
    %608 = vmatpush1.msra.mxu0 0.0
    %609 = vmatprep.subr.mxu0 0.0
    %610 = vmatpush1.msra.mxu0 0.0
    %611 = vmatprep.subr.mxu0 0.0
    %612 = vmatpush1.msra.mxu0 0.0
    %613 = vmatprep.subr.mxu0 0.0
    %614 = vmatpush1.msra.mxu0 0.0
    %615 = vmatprep.subr.mxu0 0.0
    %616 = vmatpush1.msra.mxu0 0.0
    %617 = vmatprep.mubr.f32.mxu0 0.0
    %618 = vmatmul.mubr.f32.gmra.mrb[0].mxu0 %v551
    %v619 = vpop.f32.mrb[0].mxu0
    %v620 = vadd.f32 %v549, %v619
    %v621 = vpop.f32.mrb[0].mxu0
    %622 = vdwg.mxu0
    %v623 = vld [vmem:[%s2 + $0x40] sm:$0xff]
    %v624 = vld [vmem:[%s2 + $0x48] sm:$0xff]
    %v625 = vld [vmem:[%s2 + $0x50] sm:$0xff]
    %v626 = vld [vmem:[%s2 + $0x58] sm:$0xff]
    %v627 = vld [vmem:[%s3 + $0x7] sm:$0x1]
    %vm628 = vcmask 261120
    %v630 = vsel %vm628, 0.0, 0
    %632 = vmatprep.subr.mxu0 0.0
    %633 = vmatpush1.msra.mxu0 %v623
    %634 = vmatprep.subr.mxu0 0.0
    %635 = vmatpush1.msra.mxu0 %v624
    %636 = vmatprep.subr.mxu0 0.0
    %637 = vmatpush1.msra.mxu0 %v625
    %638 = vmatprep.subr.mxu0 0.0
    %639 = vmatpush1.msra.mxu0 %v626
    %640 = vmatprep.subr.mxu0 0.0
    %641 = vmatpush1.msra.mxu0 0.0
    %642 = vmatprep.subr.mxu0 0.0
    %643 = vmatpush1.msra.mxu0 0.0
    %644 = vmatprep.subr.mxu0 0.0
    %645 = vmatpush1.msra.mxu0 0.0
    %646 = vmatprep.subr.mxu0 0.0
    %647 = vmatpush1.msra.mxu0 0.0
    %648 = vmatprep.subr.mxu0 0.0
    %649 = vmatpush1.msra.mxu0 0.0
    %650 = vmatprep.subr.mxu0 0.0
    %651 = vmatpush1.msra.mxu0 0.0
    %652 = vmatprep.subr.mxu0 0.0
    %653 = vmatpush1.msra.mxu0 0.0
    %654 = vmatprep.subr.mxu0 0.0
    %655 = vmatpush1.msra.mxu0 0.0
    %656 = vmatprep.subr.mxu0 0.0
    %657 = vmatpush1.msra.mxu0 0.0
    %658 = vmatprep.subr.mxu0 0.0
    %659 = vmatpush1.msra.mxu0 0.0
    %660 = vmatprep.subr.mxu0 0.0
    %661 = vmatpush1.msra.mxu0 0.0
    %662 = vmatprep.subr.mxu0 0.0
    %663 = vmatpush1.msra.mxu0 0.0
    %664 = vmatprep.subr.mxu0 0.0
    %665 = vmatpush1.msra.mxu0 0.0
    %666 = vmatprep.subr.mxu0 0.0
    %667 = vmatpush1.msra.mxu0 0.0
    %668 = vmatprep.subr.mxu0 0.0
    %669 = vmatpush1.msra.mxu0 0.0
    %670 = vmatprep.subr.mxu0 0.0
    %671 = vmatpush1.msra.mxu0 0.0
    %672 = vmatprep.subr.mxu0 0.0
    %673 = vmatpush1.msra.mxu0 0.0
    %674 = vmatprep.subr.mxu0 0.0
    %675 = vmatpush1.msra.mxu0 0.0
    %676 = vmatprep.subr.mxu0 0.0
    %677 = vmatpush1.msra.mxu0 0.0
    %678 = vmatprep.subr.mxu0 0.0
    %679 = vmatpush1.msra.mxu0 0.0
    %680 = vmatprep.subr.mxu0 0.0
    %681 = vmatpush1.msra.mxu0 0.0
    %682 = vmatprep.subr.mxu0 0.0
    %683 = vmatpush1.msra.mxu0 0.0
    %684 = vmatprep.subr.mxu0 0.0
    %685 = vmatpush1.msra.mxu0 0.0
    %686 = vmatprep.subr.mxu0 0.0
    %687 = vmatpush1.msra.mxu0 0.0
    %688 = vmatprep.subr.mxu0 0.0
    %689 = vmatpush1.msra.mxu0 0.0
    %690 = vmatprep.subr.mxu0 0.0
    %691 = vmatpush1.msra.mxu0 0.0
    %692 = vmatprep.subr.mxu0 0.0
    %693 = vmatpush1.msra.mxu0 0.0
    %694 = vmatprep.subr.mxu0 0.0
    %695 = vmatpush1.msra.mxu0 0.0
    %696 = vmatprep.mubr.f32.mxu0 0.0
    %697 = vmatmul.mubr.f32.gmra.mrb[0].mxu0 %v630
    %v698 = vpop.f32.mrb[0].mxu0
    %v699 = vadd.f32 %v627, %v698
    %v700 = vpop.f32.mrb[0].mxu0
    %701 = vdwg.mxu0
    %v702 = vadd.f32 %v620, %v699
    %v703 = vxor.u32 %v702, 2147483648
    %v704 = vmul.f32 %v703, 1.442695
    %v705 = vpow.pop %v704
    %v706 = vadd.f32 %v705, 1.0
    %v707 = vrcp.pop %v706
    %v708 = vmul.f32 1.0, %v707
    %710 = vrot.lane.b32.xlu0 %v699, 64
    %v711 = vpop.permute.xlu0 %710
    %v713 = vmul.f32 %v708, %v711
    %715 = vrot.lane.b32.xlu0 %v713, 64
    %v716 = vpop.permute.xlu0 %715
    %v718 = vadd.f32 %v620, %v716
    %v719 = vtanh.pop %v718
    %v720 = vsub.f32 1.0, %v708
    %722 = vrot.lane.b32.xlu0 %v719, 96
    %v723 = vpop.permute.xlu0 %722
    %v725 = vmul.f32 %v720, %v723
    %v726 = vmul.f32 %v708, 0.0
    %v727 = vadd.f32 %v725, %v726
    %729 = vrot.lane.b32.xlu0 %v727, 32
    %v730 = vpop.permute.xlu0 %729
    %vm732 = vcmask 778752
    %733 = vst.msk [vmem:[#allocation2] sm:$0x1] %vm732, %v730
    %734 = vrot.lane.b32.xlu0 %v727, 96
    %v735 = vpop.permute.xlu0 %734
    %v736 = vsel %vm628, %v735, 0
    %738 = vmatprep.subr.mxu0 0.0
    %739 = vmatpush1.msra.mxu0 %v623
    %740 = vmatprep.subr.mxu0 0.0
    %741 = vmatpush1.msra.mxu0 %v624
    %742 = vmatprep.subr.mxu0 0.0
    %743 = vmatpush1.msra.mxu0 %v625
    %744 = vmatprep.subr.mxu0 0.0
    %745 = vmatpush1.msra.mxu0 %v626
    %746 = vmatprep.subr.mxu0 0.0
    %747 = vmatpush1.msra.mxu0 0.0
    %748 = vmatprep.subr.mxu0 0.0
    %749 = vmatpush1.msra.mxu0 0.0
    %750 = vmatprep.subr.mxu0 0.0
    %751 = vmatpush1.msra.mxu0 0.0
    %752 = vmatprep.subr.mxu0 0.0
    %753 = vmatpush1.msra.mxu0 0.0
    %754 = vmatprep.subr.mxu0 0.0
    %755 = vmatpush1.msra.mxu0 0.0
    %756 = vmatprep.subr.mxu0 0.0
    %757 = vmatpush1.msra.mxu0 0.0
    %758 = vmatprep.subr.mxu0 0.0
    %759 = vmatpush1.msra.mxu0 0.0
    %760 = vmatprep.subr.mxu0 0.0
    %761 = vmatpush1.msra.mxu0 0.0
    %762 = vmatprep.subr.mxu0 0.0
    %763 = vmatpush1.msra.mxu0 0.0
    %764 = vmatprep.subr.mxu0 0.0
    %765 = vmatpush1.msra.mxu0 0.0
    %766 = vmatprep.subr.mxu0 0.0
    %767 = vmatpush1.msra.mxu0 0.0
    %768 = vmatprep.subr.mxu0 0.0
    %769 = vmatpush1.msra.mxu0 0.0
    %770 = vmatprep.subr.mxu0 0.0
    %771 = vmatpush1.msra.mxu0 0.0
    %772 = vmatprep.subr.mxu0 0.0
    %773 = vmatpush1.msra.mxu0 0.0
    %774 = vmatprep.subr.mxu0 0.0
    %775 = vmatpush1.msra.mxu0 0.0
    %776 = vmatprep.subr.mxu0 0.0
    %777 = vmatpush1.msra.mxu0 0.0
    %778 = vmatprep.subr.mxu0 0.0
    %779 = vmatpush1.msra.mxu0 0.0
    %780 = vmatprep.subr.mxu0 0.0
    %781 = vmatpush1.msra.mxu0 0.0
    %782 = vmatprep.subr.mxu0 0.0
    %783 = vmatpush1.msra.mxu0 0.0
    %784 = vmatprep.subr.mxu0 0.0
    %785 = vmatpush1.msra.mxu0 0.0
    %786 = vmatprep.subr.mxu0 0.0
    %787 = vmatpush1.msra.mxu0 0.0
    %788 = vmatprep.subr.mxu0 0.0
    %789 = vmatpush1.msra.mxu0 0.0
    %790 = vmatprep.subr.mxu0 0.0
    %791 = vmatpush1.msra.mxu0 0.0
    %792 = vmatprep.subr.mxu0 0.0
    %793 = vmatpush1.msra.mxu0 0.0
    %794 = vmatprep.subr.mxu0 0.0
    %795 = vmatpush1.msra.mxu0 0.0
    %796 = vmatprep.subr.mxu0 0.0
    %797 = vmatpush1.msra.mxu0 0.0
    %798 = vmatprep.subr.mxu0 0.0
    %799 = vmatpush1.msra.mxu0 0.0
    %800 = vmatprep.subr.mxu0 0.0
    %801 = vmatpush1.msra.mxu0 0.0
    %802 = vmatprep.mubr.f32.mxu0 0.0
    %803 = vmatmul.mubr.f32.gmra.mrb[0].mxu0 %v736
    %v804 = vpop.f32.mrb[0].mxu0
    %v805 = vadd.f32 %v627, %v804
    %v806 = vpop.f32.mrb[0].mxu0
    %807 = vdwg.mxu0
    %v809 = vrot.slane %v805, 7
    %v811 = vadd.f32 %v620, %v809
    %v812 = vxor.u32 %v811, 2147483648
    %v813 = vmul.f32 %v812, 1.442695
    %v814 = vpow.pop %v813
    %v815 = vadd.f32 %v814, 1.0
    %v816 = vrcp.pop %v815
    %v817 = vmul.f32 1.0, %v816
    %818 = vrot.lane.b32.xlu0 %v809, 64
    %v819 = vpop.permute.xlu0 %818
    %v821 = vmul.f32 %v817, %v819
    %823 = vrot.lane.b32.xlu0 %v821, 64
    %v824 = vpop.permute.xlu0 %823
    %v826 = vadd.f32 %v620, %v824
    %v827 = vtanh.pop %v826
    %v828 = vsub.f32 1.0, %v817
    %830 = vrot.lane.b32.xlu0 %v827, 96
    %v831 = vpop.permute.xlu0 %830
    %v833 = vmul.f32 %v828, %v831
    %v834 = vrot.slane %v727, 7
    %v836 = vmul.f32 %v817, %v834
    %v837 = vadd.f32 %v833, %v836
    %839 = vrot.lane.b32.xlu0 %v837, 32
    %v840 = vpop.permute.xlu0 %839
    %vm842 = vcmask 779777
    %843 = vst.msk [vmem:[#allocation2] sm:$0x2] %vm842, %v840
    %v844 = vrot.slane %v837, 1
    %845 = vrot.lane.b32.xlu0 %v844, 96
    %v846 = vpop.permute.xlu0 %845
    %v847 = vsel %vm628, %v846, 0
    %849 = vmatprep.subr.mxu0 0.0
    %850 = vmatpush1.msra.mxu0 %v623
    %851 = vmatprep.subr.mxu0 0.0
    %852 = vmatpush1.msra.mxu0 %v624
    %853 = vmatprep.subr.mxu0 0.0
    %854 = vmatpush1.msra.mxu0 %v625
    %855 = vmatprep.subr.mxu0 0.0
    %856 = vmatpush1.msra.mxu0 %v626
    %857 = vmatprep.subr.mxu0 0.0
    %858 = vmatpush1.msra.mxu0 0.0
    %859 = vmatprep.subr.mxu0 0.0
    %860 = vmatpush1.msra.mxu0 0.0
    %861 = vmatprep.subr.mxu0 0.0
    %862 = vmatpush1.msra.mxu0 0.0
    %863 = vmatprep.subr.mxu0 0.0
    %864 = vmatpush1.msra.mxu0 0.0
    %865 = vmatprep.subr.mxu0 0.0
    %866 = vmatpush1.msra.mxu0 0.0
    %867 = vmatprep.subr.mxu0 0.0
    %868 = vmatpush1.msra.mxu0 0.0
    %869 = vmatprep.subr.mxu0 0.0
    %870 = vmatpush1.msra.mxu0 0.0
    %871 = vmatprep.subr.mxu0 0.0
    %872 = vmatpush1.msra.mxu0 0.0
    %873 = vmatprep.subr.mxu0 0.0
    %874 = vmatpush1.msra.mxu0 0.0
    %875 = vmatprep.subr.mxu0 0.0
    %876 = vmatpush1.msra.mxu0 0.0
    %877 = vmatprep.subr.mxu0 0.0
    %878 = vmatpush1.msra.mxu0 0.0
    %879 = vmatprep.subr.mxu0 0.0
    %880 = vmatpush1.msra.mxu0 0.0
    %881 = vmatprep.subr.mxu0 0.0
    %882 = vmatpush1.msra.mxu0 0.0
    %883 = vmatprep.subr.mxu0 0.0
    %884 = vmatpush1.msra.mxu0 0.0
    %885 = vmatprep.subr.mxu0 0.0
    %886 = vmatpush1.msra.mxu0 0.0
    %887 = vmatprep.subr.mxu0 0.0
    %888 = vmatpush1.msra.mxu0 0.0
    %889 = vmatprep.subr.mxu0 0.0
    %890 = vmatpush1.msra.mxu0 0.0
    %891 = vmatprep.subr.mxu0 0.0
    %892 = vmatpush1.msra.mxu0 0.0
    %893 = vmatprep.subr.mxu0 0.0
    %894 = vmatpush1.msra.mxu0 0.0
    %895 = vmatprep.subr.mxu0 0.0
    %896 = vmatpush1.msra.mxu0 0.0
    %897 = vmatprep.subr.mxu0 0.0
    %898 = vmatpush1.msra.mxu0 0.0
    %899 = vmatprep.subr.mxu0 0.0
    %900 = vmatpush1.msra.mxu0 0.0
    %901 = vmatprep.subr.mxu0 0.0
    %902 = vmatpush1.msra.mxu0 0.0
    %903 = vmatprep.subr.mxu0 0.0
    %904 = vmatpush1.msra.mxu0 0.0
    %905 = vmatprep.subr.mxu0 0.0
    %906 = vmatpush1.msra.mxu0 0.0
    %907 = vmatprep.subr.mxu0 0.0
    %908 = vmatpush1.msra.mxu0 0.0
    %909 = vmatprep.subr.mxu0 0.0
    %910 = vmatpush1.msra.mxu0 0.0
    %911 = vmatprep.subr.mxu0 0.0
    %912 = vmatpush1.msra.mxu0 0.0
    %913 = vmatprep.mubr.f32.mxu0 0.0
    %914 = vmatmul.mubr.f32.gmra.mrb[0].mxu0 %v847
    %v915 = vpop.f32.mrb[0].mxu0
    %v916 = vadd.f32 %v627, %v915
    %v917 = vpop.f32.mrb[0].mxu0
    %918 = vdwg.mxu0
    %v920 = vrot.slane %v916, 6
    %v922 = vadd.f32 %v620, %v920
    %v923 = vxor.u32 %v922, 2147483648
    %v924 = vmul.f32 %v923, 1.442695
    %v925 = vpow.pop %v924
    %v926 = vadd.f32 %v925, 1.0
    %v927 = vrcp.pop %v926
    %v928 = vmul.f32 1.0, %v927
    %929 = vrot.lane.b32.xlu0 %v920, 64
    %v930 = vpop.permute.xlu0 %929
    %v932 = vmul.f32 %v928, %v930
    %934 = vrot.lane.b32.xlu0 %v932, 64
    %v935 = vpop.permute.xlu0 %934
    %v937 = vadd.f32 %v620, %v935
    %v938 = vtanh.pop %v937
    %v939 = vsub.f32 1.0, %v928
    %941 = vrot.lane.b32.xlu0 %v938, 96
    %v942 = vpop.permute.xlu0 %941
    %v944 = vmul.f32 %v939, %v942
    %v945 = vrot.slane %v837, 7
    %v947 = vmul.f32 %v928, %v945
    %v948 = vadd.f32 %v944, %v947
    %950 = vrot.lane.b32.xlu0 %v948, 32
    %v951 = vpop.permute.xlu0 %950
    %vm953 = vcmask 780802
    %954 = vst.msk [vmem:[#allocation2] sm:$0x4] %vm953, %v951
    %v955 = vrot.slane %v948, 2
    %956 = vrot.lane.b32.xlu0 %v955, 96
    %v957 = vpop.permute.xlu0 %956
    %v958 = vsel %vm628, %v957, 0
    %960 = vmatprep.subr.mxu0 0.0
    %961 = vmatpush1.msra.mxu0 %v623
    %962 = vmatprep.subr.mxu0 0.0
    %963 = vmatpush1.msra.mxu0 %v624
    %964 = vmatprep.subr.mxu0 0.0
    %965 = vmatpush1.msra.mxu0 %v625
    %966 = vmatprep.subr.mxu0 0.0
    %967 = vmatpush1.msra.mxu0 %v626
    %968 = vmatprep.subr.mxu0 0.0
    %969 = vmatpush1.msra.mxu0 0.0
    %970 = vmatprep.subr.mxu0 0.0
    %971 = vmatpush1.msra.mxu0 0.0
    %972 = vmatprep.subr.mxu0 0.0
    %973 = vmatpush1.msra.mxu0 0.0
    %974 = vmatprep.subr.mxu0 0.0
    %975 = vmatpush1.msra.mxu0 0.0
    %976 = vmatprep.subr.mxu0 0.0
    %977 = vmatpush1.msra.mxu0 0.0
    %978 = vmatprep.subr.mxu0 0.0
    %979 = vmatpush1.msra.mxu0 0.0
    %980 = vmatprep.subr.mxu0 0.0
    %981 = vmatpush1.msra.mxu0 0.0
    %982 = vmatprep.subr.mxu0 0.0
    %983 = vmatpush1.msra.mxu0 0.0
    %984 = vmatprep.subr.mxu0 0.0
    %985 = vmatpush1.msra.mxu0 0.0
    %986 = vmatprep.subr.mxu0 0.0
    %987 = vmatpush1.msra.mxu0 0.0
    %988 = vmatprep.subr.mxu0 0.0
    %989 = vmatpush1.msra.mxu0 0.0
    %990 = vmatprep.subr.mxu0 0.0
    %991 = vmatpush1.msra.mxu0 0.0
    %992 = vmatprep.subr.mxu0 0.0
    %993 = vmatpush1.msra.mxu0 0.0
    %994 = vmatprep.subr.mxu0 0.0
    %995 = vmatpush1.msra.mxu0 0.0
    %996 = vmatprep.subr.mxu0 0.0
    %997 = vmatpush1.msra.mxu0 0.0
    %998 = vmatprep.subr.mxu0 0.0
    %999 = vmatpush1.msra.mxu0 0.0
    %1000 = vmatprep.subr.mxu0 0.0
    %1001 = vmatpush1.msra.mxu0 0.0
    %1002 = vmatprep.subr.mxu0 0.0
    %1003 = vmatpush1.msra.mxu0 0.0
    %1004 = vmatprep.subr.mxu0 0.0
    %1005 = vmatpush1.msra.mxu0 0.0
    %1006 = vmatprep.subr.mxu0 0.0
    %1007 = vmatpush1.msra.mxu0 0.0
    %1008 = vmatprep.subr.mxu0 0.0
    %1009 = vmatpush1.msra.mxu0 0.0
    %1010 = vmatprep.subr.mxu0 0.0
    %1011 = vmatpush1.msra.mxu0 0.0
    %1012 = vmatprep.subr.mxu0 0.0
    %1013 = vmatpush1.msra.mxu0 0.0
    %1014 = vmatprep.subr.mxu0 0.0
    %1015 = vmatpush1.msra.mxu0 0.0
    %1016 = vmatprep.subr.mxu0 0.0
    %1017 = vmatpush1.msra.mxu0 0.0
    %1018 = vmatprep.subr.mxu0 0.0
    %1019 = vmatpush1.msra.mxu0 0.0
    %1020 = vmatprep.subr.mxu0 0.0
    %1021 = vmatpush1.msra.mxu0 0.0
    %1022 = vmatprep.subr.mxu0 0.0
    %1023 = vmatpush1.msra.mxu0 0.0
    %1024 = vmatprep.mubr.f32.mxu0 0.0
    %1025 = vmatmul.mubr.f32.gmra.mrb[0].mxu0 %v958
    %v1026 = vpop.f32.mrb[0].mxu0
    %v1027 = vadd.f32 %v627, %v1026
    %v1028 = vpop.f32.mrb[0].mxu0
    %1029 = vdwg.mxu0
    %v1031 = vrot.slane %v1027, 5
    %v1033 = vadd.f32 %v620, %v1031
    %v1034 = vxor.u32 %v1033, 2147483648
    %v1035 = vmul.f32 %v1034, 1.442695
    %v1036 = vpow.pop %v1035
    %v1037 = vadd.f32 %v1036, 1.0
    %v1038 = vrcp.pop %v1037
    %v1039 = vmul.f32 1.0, %v1038
    %1040 = vrot.lane.b32.xlu0 %v1031, 64
    %v1041 = vpop.permute.xlu0 %1040
    %v1043 = vmul.f32 %v1039, %v1041
    %1045 = vrot.lane.b32.xlu0 %v1043, 64
    %v1046 = vpop.permute.xlu0 %1045
    %v1048 = vadd.f32 %v620, %v1046
    %v1049 = vtanh.pop %v1048
    %v1050 = vsub.f32 1.0, %v1039
    %1052 = vrot.lane.b32.xlu0 %v1049, 96
    %v1053 = vpop.permute.xlu0 %1052
    %v1055 = vmul.f32 %v1050, %v1053
    %v1056 = vrot.slane %v948, 7
    %v1058 = vmul.f32 %v1039, %v1056
    %v1059 = vadd.f32 %v1055, %v1058
    %1061 = vrot.lane.b32.xlu0 %v1059, 32
    %v1062 = vpop.permute.xlu0 %1061
    %vm1064 = vcmask 781827
    %1065 = vst.msk [vmem:[#allocation2] sm:$0x8] %vm1064, %v1062
    %v1066 = vrot.slane %v1059, 3
    %1067 = vrot.lane.b32.xlu0 %v1066, 96
    %v1068 = vpop.permute.xlu0 %1067
    %v1069 = vsel %vm628, %v1068, 0
    %1071 = vmatprep.subr.mxu0 0.0
    %1072 = vmatpush1.msra.mxu0 %v623
    %1073 = vmatprep.subr.mxu0 0.0
    %1074 = vmatpush1.msra.mxu0 %v624
    %1075 = vmatprep.subr.mxu0 0.0
    %1076 = vmatpush1.msra.mxu0 %v625
    %1077 = vmatprep.subr.mxu0 0.0
    %1078 = vmatpush1.msra.mxu0 %v626
    %1079 = vmatprep.subr.mxu0 0.0
    %1080 = vmatpush1.msra.mxu0 0.0
    %1081 = vmatprep.subr.mxu0 0.0
    %1082 = vmatpush1.msra.mxu0 0.0
    %1083 = vmatprep.subr.mxu0 0.0
    %1084 = vmatpush1.msra.mxu0 0.0
    %1085 = vmatprep.subr.mxu0 0.0
    %1086 = vmatpush1.msra.mxu0 0.0
    %1087 = vmatprep.subr.mxu0 0.0
    %1088 = vmatpush1.msra.mxu0 0.0
    %1089 = vmatprep.subr.mxu0 0.0
    %1090 = vmatpush1.msra.mxu0 0.0
    %1091 = vmatprep.subr.mxu0 0.0
    %1092 = vmatpush1.msra.mxu0 0.0
    %1093 = vmatprep.subr.mxu0 0.0
    %1094 = vmatpush1.msra.mxu0 0.0
    %1095 = vmatprep.subr.mxu0 0.0
    %1096 = vmatpush1.msra.mxu0 0.0
    %1097 = vmatprep.subr.mxu0 0.0
    %1098 = vmatpush1.msra.mxu0 0.0
    %1099 = vmatprep.subr.mxu0 0.0
    %1100 = vmatpush1.msra.mxu0 0.0
    %1101 = vmatprep.subr.mxu0 0.0
    %1102 = vmatpush1.msra.mxu0 0.0
    %1103 = vmatprep.subr.mxu0 0.0
    %1104 = vmatpush1.msra.mxu0 0.0
    %1105 = vmatprep.subr.mxu0 0.0
    %1106 = vmatpush1.msra.mxu0 0.0
    %1107 = vmatprep.subr.mxu0 0.0
    %1108 = vmatpush1.msra.mxu0 0.0
    %1109 = vmatprep.subr.mxu0 0.0
    %1110 = vmatpush1.msra.mxu0 0.0
    %1111 = vmatprep.subr.mxu0 0.0
    %1112 = vmatpush1.msra.mxu0 0.0
    %1113 = vmatprep.subr.mxu0 0.0
    %1114 = vmatpush1.msra.mxu0 0.0
    %1115 = vmatprep.subr.mxu0 0.0
    %1116 = vmatpush1.msra.mxu0 0.0
    %1117 = vmatprep.subr.mxu0 0.0
    %1118 = vmatpush1.msra.mxu0 0.0
    %1119 = vmatprep.subr.mxu0 0.0
    %1120 = vmatpush1.msra.mxu0 0.0
    %1121 = vmatprep.subr.mxu0 0.0
    %1122 = vmatpush1.msra.mxu0 0.0
    %1123 = vmatprep.subr.mxu0 0.0
    %1124 = vmatpush1.msra.mxu0 0.0
    %1125 = vmatprep.subr.mxu0 0.0
    %1126 = vmatpush1.msra.mxu0 0.0
    %1127 = vmatprep.subr.mxu0 0.0
    %1128 = vmatpush1.msra.mxu0 0.0
    %1129 = vmatprep.subr.mxu0 0.0
    %1130 = vmatpush1.msra.mxu0 0.0
    %1131 = vmatprep.subr.mxu0 0.0
    %1132 = vmatpush1.msra.mxu0 0.0
    %1133 = vmatprep.subr.mxu0 0.0
    %1134 = vmatpush1.msra.mxu0 0.0
    %1135 = vmatprep.mubr.f32.mxu0 0.0
    %1136 = vmatmul.mubr.f32.gmra.mrb[0].mxu0 %v1069
    %v1137 = vpop.f32.mrb[0].mxu0
    %v1138 = vadd.f32 %v627, %v1137
    %v1139 = vpop.f32.mrb[0].mxu0
    %1140 = vdwg.mxu0
    %v1142 = vrot.slane %v1138, 4
    %v1144 = vadd.f32 %v620, %v1142
    %v1145 = vxor.u32 %v1144, 2147483648
    %v1146 = vmul.f32 %v1145, 1.442695
    %v1147 = vpow.pop %v1146
    %v1148 = vadd.f32 %v1147, 1.0
    %v1149 = vrcp.pop %v1148
    %v1150 = vmul.f32 1.0, %v1149
    %1151 = vrot.lane.b32.xlu0 %v1142, 64
    %v1152 = vpop.permute.xlu0 %1151
    %v1154 = vmul.f32 %v1150, %v1152
    %1156 = vrot.lane.b32.xlu0 %v1154, 64
    %v1157 = vpop.permute.xlu0 %1156
    %v1159 = vadd.f32 %v620, %v1157
    %v1160 = vtanh.pop %v1159
    %v1161 = vsub.f32 1.0, %v1150
    %1163 = vrot.lane.b32.xlu0 %v1160, 96
    %v1164 = vpop.permute.xlu0 %1163
    %v1166 = vmul.f32 %v1161, %v1164
    %v1167 = vrot.slane %v1059, 7
    %v1169 = vmul.f32 %v1150, %v1167
    %v1170 = vadd.f32 %v1166, %v1169
    %1172 = vrot.lane.b32.xlu0 %v1170, 32
    %v1173 = vpop.permute.xlu0 %1172
    %vm1175 = vcmask 782852
    %1176 = vst.msk [vmem:[#allocation2] sm:$0x10] %vm1175, %v1173
    %v1177 = vrot.slane %v1170, 4
    %1178 = vrot.lane.b32.xlu0 %v1177, 96
    %v1179 = vpop.permute.xlu0 %1178
    %v1180 = vsel %vm628, %v1179, 0
    %1182 = vmatprep.subr.mxu0 0.0
    %1183 = vmatpush1.msra.mxu0 %v623
    %1184 = vmatprep.subr.mxu0 0.0
    %1185 = vmatpush1.msra.mxu0 %v624
    %1186 = vmatprep.subr.mxu0 0.0
    %1187 = vmatpush1.msra.mxu0 %v625
    %1188 = vmatprep.subr.mxu0 0.0
    %1189 = vmatpush1.msra.mxu0 %v626
    %1190 = vmatprep.subr.mxu0 0.0
    %1191 = vmatpush1.msra.mxu0 0.0
    %1192 = vmatprep.subr.mxu0 0.0
    %1193 = vmatpush1.msra.mxu0 0.0
    %1194 = vmatprep.subr.mxu0 0.0
    %1195 = vmatpush1.msra.mxu0 0.0
    %1196 = vmatprep.subr.mxu0 0.0
    %1197 = vmatpush1.msra.mxu0 0.0
    %1198 = vmatprep.subr.mxu0 0.0
    %1199 = vmatpush1.msra.mxu0 0.0
    %1200 = vmatprep.subr.mxu0 0.0
    %1201 = vmatpush1.msra.mxu0 0.0
    %1202 = vmatprep.subr.mxu0 0.0
    %1203 = vmatpush1.msra.mxu0 0.0
    %1204 = vmatprep.subr.mxu0 0.0
    %1205 = vmatpush1.msra.mxu0 0.0
    %1206 = vmatprep.subr.mxu0 0.0
    %1207 = vmatpush1.msra.mxu0 0.0
    %1208 = vmatprep.subr.mxu0 0.0
    %1209 = vmatpush1.msra.mxu0 0.0
    %1210 = vmatprep.subr.mxu0 0.0
    %1211 = vmatpush1.msra.mxu0 0.0
    %1212 = vmatprep.subr.mxu0 0.0
    %1213 = vmatpush1.msra.mxu0 0.0
    %1214 = vmatprep.subr.mxu0 0.0
    %1215 = vmatpush1.msra.mxu0 0.0
    %1216 = vmatprep.subr.mxu0 0.0
    %1217 = vmatpush1.msra.mxu0 0.0
    %1218 = vmatprep.subr.mxu0 0.0
    %1219 = vmatpush1.msra.mxu0 0.0
    %1220 = vmatprep.subr.mxu0 0.0
    %1221 = vmatpush1.msra.mxu0 0.0
    %1222 = vmatprep.subr.mxu0 0.0
    %1223 = vmatpush1.msra.mxu0 0.0
    %1224 = vmatprep.subr.mxu0 0.0
    %1225 = vmatpush1.msra.mxu0 0.0
    %1226 = vmatprep.subr.mxu0 0.0
    %1227 = vmatpush1.msra.mxu0 0.0
    %1228 = vmatprep.subr.mxu0 0.0
    %1229 = vmatpush1.msra.mxu0 0.0
    %1230 = vmatprep.subr.mxu0 0.0
    %1231 = vmatpush1.msra.mxu0 0.0
    %1232 = vmatprep.subr.mxu0 0.0
    %1233 = vmatpush1.msra.mxu0 0.0
    %1234 = vmatprep.subr.mxu0 0.0
    %1235 = vmatpush1.msra.mxu0 0.0
    %1236 = vmatprep.subr.mxu0 0.0
    %1237 = vmatpush1.msra.mxu0 0.0
    %1238 = vmatprep.subr.mxu0 0.0
    %1239 = vmatpush1.msra.mxu0 0.0
    %1240 = vmatprep.subr.mxu0 0.0
    %1241 = vmatpush1.msra.mxu0 0.0
    %1242 = vmatprep.subr.mxu0 0.0
    %1243 = vmatpush1.msra.mxu0 0.0
    %1244 = vmatprep.subr.mxu0 0.0
    %1245 = vmatpush1.msra.mxu0 0.0
    %1246 = vmatprep.mubr.f32.mxu0 0.0
    %1247 = vmatmul.mubr.f32.gmra.mrb[0].mxu0 %v1180
    %v1248 = vpop.f32.mrb[0].mxu0
    %v1249 = vadd.f32 %v627, %v1248
    %v1250 = vpop.f32.mrb[0].mxu0
    %1251 = vdwg.mxu0
    %v1253 = vrot.slane %v1249, 3
    %v1255 = vadd.f32 %v620, %v1253
    %v1256 = vxor.u32 %v1255, 2147483648
    %v1257 = vmul.f32 %v1256, 1.442695
    %v1258 = vpow.pop %v1257
    %v1259 = vadd.f32 %v1258, 1.0
    %v1260 = vrcp.pop %v1259
    %v1261 = vmul.f32 1.0, %v1260
    %1262 = vrot.lane.b32.xlu0 %v1253, 64
    %v1263 = vpop.permute.xlu0 %1262
    %v1265 = vmul.f32 %v1261, %v1263
    %1267 = vrot.lane.b32.xlu0 %v1265, 64
    %v1268 = vpop.permute.xlu0 %1267
    %v1270 = vadd.f32 %v620, %v1268
    %v1271 = vtanh.pop %v1270
    %v1272 = vsub.f32 1.0, %v1261
    %1274 = vrot.lane.b32.xlu0 %v1271, 96
    %v1275 = vpop.permute.xlu0 %1274
    %v1277 = vmul.f32 %v1272, %v1275
    %v1278 = vrot.slane %v1170, 7
    %v1280 = vmul.f32 %v1261, %v1278
    %v1281 = vadd.f32 %v1277, %v1280
    %1283 = vrot.lane.b32.xlu0 %v1281, 32
    %v1284 = vpop.permute.xlu0 %1283
    %vm1286 = vcmask 783877
    %1287 = vst.msk [vmem:[#allocation2] sm:$0x20] %vm1286, %v1284
    %v1288 = vrot.slane %v1281, 5
    %1289 = vrot.lane.b32.xlu0 %v1288, 96
    %v1290 = vpop.permute.xlu0 %1289
    %v1291 = vsel %vm628, %v1290, 0
    %1293 = vmatprep.subr.mxu0 0.0
    %1294 = vmatpush1.msra.mxu0 %v623
    %1295 = vmatprep.subr.mxu0 0.0
    %1296 = vmatpush1.msra.mxu0 %v624
    %1297 = vmatprep.subr.mxu0 0.0
    %1298 = vmatpush1.msra.mxu0 %v625
    %1299 = vmatprep.subr.mxu0 0.0
    %1300 = vmatpush1.msra.mxu0 %v626
    %1301 = vmatprep.subr.mxu0 0.0
    %1302 = vmatpush1.msra.mxu0 0.0
    %1303 = vmatprep.subr.mxu0 0.0
    %1304 = vmatpush1.msra.mxu0 0.0
    %1305 = vmatprep.subr.mxu0 0.0
    %1306 = vmatpush1.msra.mxu0 0.0
    %1307 = vmatprep.subr.mxu0 0.0
    %1308 = vmatpush1.msra.mxu0 0.0
    %1309 = vmatprep.subr.mxu0 0.0
    %1310 = vmatpush1.msra.mxu0 0.0
    %1311 = vmatprep.subr.mxu0 0.0
    %1312 = vmatpush1.msra.mxu0 0.0
    %1313 = vmatprep.subr.mxu0 0.0
    %1314 = vmatpush1.msra.mxu0 0.0
    %1315 = vmatprep.subr.mxu0 0.0
    %1316 = vmatpush1.msra.mxu0 0.0
    %1317 = vmatprep.subr.mxu0 0.0
    %1318 = vmatpush1.msra.mxu0 0.0
    %1319 = vmatprep.subr.mxu0 0.0
    %1320 = vmatpush1.msra.mxu0 0.0
    %1321 = vmatprep.subr.mxu0 0.0
    %1322 = vmatpush1.msra.mxu0 0.0
    %1323 = vmatprep.subr.mxu0 0.0
    %1324 = vmatpush1.msra.mxu0 0.0
    %1325 = vmatprep.subr.mxu0 0.0
    %1326 = vmatpush1.msra.mxu0 0.0
    %1327 = vmatprep.subr.mxu0 0.0
    %1328 = vmatpush1.msra.mxu0 0.0
    %1329 = vmatprep.subr.mxu0 0.0
    %1330 = vmatpush1.msra.mxu0 0.0
    %1331 = vmatprep.subr.mxu0 0.0
    %1332 = vmatpush1.msra.mxu0 0.0
    %1333 = vmatprep.subr.mxu0 0.0
    %1334 = vmatpush1.msra.mxu0 0.0
    %1335 = vmatprep.subr.mxu0 0.0
    %1336 = vmatpush1.msra.mxu0 0.0
    %1337 = vmatprep.subr.mxu0 0.0
    %1338 = vmatpush1.msra.mxu0 0.0
    %1339 = vmatprep.subr.mxu0 0.0
    %1340 = vmatpush1.msra.mxu0 0.0
    %1341 = vmatprep.subr.mxu0 0.0
    %1342 = vmatpush1.msra.mxu0 0.0
    %1343 = vmatprep.subr.mxu0 0.0
    %1344 = vmatpush1.msra.mxu0 0.0
    %1345 = vmatprep.subr.mxu0 0.0
    %1346 = vmatpush1.msra.mxu0 0.0
    %1347 = vmatprep.subr.mxu0 0.0
    %1348 = vmatpush1.msra.mxu0 0.0
    %1349 = vmatprep.subr.mxu0 0.0
    %1350 = vmatpush1.msra.mxu0 0.0
    %1351 = vmatprep.subr.mxu0 0.0
    %1352 = vmatpush1.msra.mxu0 0.0
    %1353 = vmatprep.subr.mxu0 0.0
    %1354 = vmatpush1.msra.mxu0 0.0
    %1355 = vmatprep.subr.mxu0 0.0
    %1356 = vmatpush1.msra.mxu0 0.0
    %1357 = vmatprep.mubr.f32.mxu0 0.0
    %1358 = vmatmul.mubr.f32.gmra.mrb[0].mxu0 %v1291
    %v1359 = vpop.f32.mrb[0].mxu0
    %v1360 = vadd.f32 %v627, %v1359
    %v1361 = vpop.f32.mrb[0].mxu0
    %1362 = vdwg.mxu0
    %v1364 = vrot.slane %v1360, 2
    %v1366 = vadd.f32 %v620, %v1364
    %v1367 = vxor.u32 %v1366, 2147483648
    %v1368 = vmul.f32 %v1367, 1.442695
    %v1369 = vpow.pop %v1368
    %v1370 = vadd.f32 %v1369, 1.0
    %v1371 = vrcp.pop %v1370
    %v1372 = vmul.f32 1.0, %v1371
    %1373 = vrot.lane.b32.xlu0 %v1364, 64
    %v1374 = vpop.permute.xlu0 %1373
    %v1376 = vmul.f32 %v1372, %v1374
    %1378 = vrot.lane.b32.xlu0 %v1376, 64
    %v1379 = vpop.permute.xlu0 %1378
    %v1381 = vadd.f32 %v620, %v1379
    %v1382 = vtanh.pop %v1381
    %v1383 = vsub.f32 1.0, %v1372
    %1385 = vrot.lane.b32.xlu0 %v1382, 96
    %v1386 = vpop.permute.xlu0 %1385
    %v1388 = vmul.f32 %v1383, %v1386
    %v1389 = vrot.slane %v1281, 7
    %v1391 = vmul.f32 %v1372, %v1389
    %v1392 = vadd.f32 %v1388, %v1391
    %1394 = vrot.lane.b32.xlu0 %v1392, 32
    %v1395 = vpop.permute.xlu0 %1394
    %vm1397 = vcmask 784902
    %1398 = vst.msk [vmem:[#allocation2] sm:$0x40] %vm1397, %v1395
    %v1399 = vrot.slane %v1392, 6
    %1400 = vrot.lane.b32.xlu0 %v1399, 96
    %v1401 = vpop.permute.xlu0 %1400
    %v1402 = vsel %vm628, %v1401, 0
    %1404 = vmatprep.subr.mxu0 0.0
    %1405 = vmatpush1.msra.mxu0 %v623
    %1406 = vmatprep.subr.mxu0 0.0
    %1407 = vmatpush1.msra.mxu0 %v624
    %1408 = vmatprep.subr.mxu0 0.0
    %1409 = vmatpush1.msra.mxu0 %v625
    %1410 = vmatprep.subr.mxu0 0.0
    %1411 = vmatpush1.msra.mxu0 %v626
    %1412 = vmatprep.subr.mxu0 0.0
    %1413 = vmatpush1.msra.mxu0 0.0
    %1414 = vmatprep.subr.mxu0 0.0
    %1415 = vmatpush1.msra.mxu0 0.0
    %1416 = vmatprep.subr.mxu0 0.0
    %1417 = vmatpush1.msra.mxu0 0.0
    %1418 = vmatprep.subr.mxu0 0.0
    %1419 = vmatpush1.msra.mxu0 0.0
    %1420 = vmatprep.subr.mxu0 0.0
    %1421 = vmatpush1.msra.mxu0 0.0
    %1422 = vmatprep.subr.mxu0 0.0
    %1423 = vmatpush1.msra.mxu0 0.0
    %1424 = vmatprep.subr.mxu0 0.0
    %1425 = vmatpush1.msra.mxu0 0.0
    %1426 = vmatprep.subr.mxu0 0.0
    %1427 = vmatpush1.msra.mxu0 0.0
    %1428 = vmatprep.subr.mxu0 0.0
    %1429 = vmatpush1.msra.mxu0 0.0
    %1430 = vmatprep.subr.mxu0 0.0
    %1431 = vmatpush1.msra.mxu0 0.0
    %1432 = vmatprep.subr.mxu0 0.0
    %1433 = vmatpush1.msra.mxu0 0.0
    %1434 = vmatprep.subr.mxu0 0.0
    %1435 = vmatpush1.msra.mxu0 0.0
    %1436 = vmatprep.subr.mxu0 0.0
    %1437 = vmatpush1.msra.mxu0 0.0
    %1438 = vmatprep.subr.mxu0 0.0
    %1439 = vmatpush1.msra.mxu0 0.0
    %1440 = vmatprep.subr.mxu0 0.0
    %1441 = vmatpush1.msra.mxu0 0.0
    %1442 = vmatprep.subr.mxu0 0.0
    %1443 = vmatpush1.msra.mxu0 0.0
    %1444 = vmatprep.subr.mxu0 0.0
    %1445 = vmatpush1.msra.mxu0 0.0
    %1446 = vmatprep.subr.mxu0 0.0
    %1447 = vmatpush1.msra.mxu0 0.0
    %1448 = vmatprep.subr.mxu0 0.0
    %1449 = vmatpush1.msra.mxu0 0.0
    %1450 = vmatprep.subr.mxu0 0.0
    %1451 = vmatpush1.msra.mxu0 0.0
    %1452 = vmatprep.subr.mxu0 0.0
    %1453 = vmatpush1.msra.mxu0 0.0
    %1454 = vmatprep.subr.mxu0 0.0
    %1455 = vmatpush1.msra.mxu0 0.0
    %1456 = vmatprep.subr.mxu0 0.0
    %1457 = vmatpush1.msra.mxu0 0.0
    %1458 = vmatprep.subr.mxu0 0.0
    %1459 = vmatpush1.msra.mxu0 0.0
    %1460 = vmatprep.subr.mxu0 0.0
    %1461 = vmatpush1.msra.mxu0 0.0
    %1462 = vmatprep.subr.mxu0 0.0
    %1463 = vmatpush1.msra.mxu0 0.0
    %1464 = vmatprep.subr.mxu0 0.0
    %1465 = vmatpush1.msra.mxu0 0.0
    %1466 = vmatprep.subr.mxu0 0.0
    %1467 = vmatpush1.msra.mxu0 0.0
    %1468 = vmatprep.mubr.f32.mxu0 0.0
    %1469 = vmatmul.mubr.f32.gmra.mrb[0].mxu0 %v1402
    %v1470 = vpop.f32.mrb[0].mxu0
    %v1471 = vadd.f32 %v627, %v1470
    %v1472 = vpop.f32.mrb[0].mxu0
    %1473 = vdwg.mxu0
    %v1475 = vrot.slane %v1471, 1
    %v1477 = vadd.f32 %v620, %v1475
    %v1478 = vxor.u32 %v1477, 2147483648
    %v1479 = vmul.f32 %v1478, 1.442695
    %v1480 = vpow.pop %v1479
    %v1481 = vadd.f32 %v1480, 1.0
    %v1482 = vrcp.pop %v1481
    %v1483 = vmul.f32 1.0, %v1482
    %1484 = vrot.lane.b32.xlu0 %v1475, 64
    %v1485 = vpop.permute.xlu0 %1484
    %v1487 = vmul.f32 %v1483, %v1485
    %1489 = vrot.lane.b32.xlu0 %v1487, 64
    %v1490 = vpop.permute.xlu0 %1489
    %v1492 = vadd.f32 %v620, %v1490
    %v1493 = vtanh.pop %v1492
    %v1494 = vsub.f32 1.0, %v1483
    %1496 = vrot.lane.b32.xlu0 %v1493, 96
    %v1497 = vpop.permute.xlu0 %1496
    %v1499 = vmul.f32 %v1494, %v1497
    %v1500 = vrot.slane %v1392, 7
    %v1502 = vmul.f32 %v1483, %v1500
    %v1503 = vadd.f32 %v1499, %v1502
    %1505 = vrot.lane.b32.xlu0 %v1503, 32
    %v1506 = vpop.permute.xlu0 %1505
    %vm1508 = vcmask 785927
    %1509 = vst.msk [vmem:[#allocation2] sm:$0x80] %vm1508, %v1506
    %s1510 = scalar_lea.vmem %s1, 576
    %v1511 = vld [vmem:[%s1510] sm:$0xff]
    %v1512 = vld [vmem:[%s1510 + $0x8] sm:$0xff]
    %v1513 = vld [vmem:[%s1510 + $0x10] sm:$0xff]
    %v1514 = vld [vmem:[%s1510 + $0x18] sm:$0xff]
    %v1515 = vld [vmem:[%s1510 + $0x20] sm:$0xff]
    %v1516 = vld [vmem:[%s1510 + $0x28] sm:$0xff]
    %v1517 = vld [vmem:[%s1510 + $0x30] sm:$0xff]
    %v1518 = vld [vmem:[%s1510 + $0x38] sm:$0xff]
    %v1519 = vld [vmem:[#allocation2] sm:$0xff]
    %s1520 = scalar_lea.vmem %s1, 192
    %v1521 = vld [vmem:[%s1520] sm:$0xff]
    %v1522 = vld [vmem:[%s1520 + $0x8] sm:$0xff]
    %v1523 = vld [vmem:[%s1520 + $0x10] sm:$0xff]
    %v1524 = vld [vmem:[%s1520 + $0x18] sm:$0xff]
    %v1525 = vld [vmem:[%s1520 + $0x20] sm:$0xff]
    %v1526 = vld [vmem:[%s1520 + $0x28] sm:$0xff]
    %v1527 = vld [vmem:[%s1520 + $0x30] sm:$0xff]
    %v1528 = vld [vmem:[%s1520 + $0x38] sm:$0xff]
    %v1529 = vld [vmem:[%s1520 + $0x40] sm:$0xff]
    %v1530 = vld [vmem:[%s1520 + $0x48] sm:$0xff]
    %v1531 = vld [vmem:[%s1520 + $0x50] sm:$0xff]
    %v1532 = vld [vmem:[%s1520 + $0x58] sm:$0xff]
    %v1533 = vld [vmem:[%s3 + $0x8] sm:$0x1]
    %v1534 = vlaneseq
    %v1535 = vshrl.u32 %v1534, 7
    %v1536 = vsub.s32 0, %v1535
    %v1537 = vrot.slane %v1533, %v1536
    %vm1538 = vcmask 785408
    %v1540 = vsel %vm1538, %v1519, 0
    %1542 = vmatprep.subr.mxu0 0.0
    %1543 = vmatpush1.msra.mxu0 %v1521
    %1544 = vmatprep.subr.mxu0 0.0
    %1545 = vmatpush1.msra.mxu0 %v1522
    %1546 = vmatprep.subr.mxu0 0.0
    %1547 = vmatpush1.msra.mxu0 %v1523
    %1548 = vmatprep.subr.mxu0 0.0
    %1549 = vmatpush1.msra.mxu0 %v1524
    %1550 = vmatprep.subr.mxu0 0.0
    %1551 = vmatpush1.msra.mxu0 %v1525
    %1552 = vmatprep.subr.mxu0 0.0
    %1553 = vmatpush1.msra.mxu0 %v1526
    %1554 = vmatprep.subr.mxu0 0.0
    %1555 = vmatpush1.msra.mxu0 %v1527
    %1556 = vmatprep.subr.mxu0 0.0
    %1557 = vmatpush1.msra.mxu0 %v1528
    %1558 = vmatprep.subr.mxu0 0.0
    %1559 = vmatpush1.msra.mxu0 %v1529
    %1560 = vmatprep.subr.mxu0 0.0
    %1561 = vmatpush1.msra.mxu0 %v1530
    %1562 = vmatprep.subr.mxu0 0.0
    %1563 = vmatpush1.msra.mxu0 %v1531
    %1564 = vmatprep.subr.mxu0 0.0
    %1565 = vmatpush1.msra.mxu0 %v1532
    %1566 = vmatprep.subr.mxu0 0.0
    %1567 = vmatpush1.msra.mxu0 0.0
    %1568 = vmatprep.subr.mxu0 0.0
    %1569 = vmatpush1.msra.mxu0 0.0
    %1570 = vmatprep.subr.mxu0 0.0
    %1571 = vmatpush1.msra.mxu0 0.0
    %1572 = vmatprep.subr.mxu0 0.0
    %1573 = vmatpush1.msra.mxu0 0.0
    %1574 = vmatprep.subr.mxu0 0.0
    %1575 = vmatpush1.msra.mxu0 0.0
    %1576 = vmatprep.subr.mxu0 0.0
    %1577 = vmatpush1.msra.mxu0 0.0
    %1578 = vmatprep.subr.mxu0 0.0
    %1579 = vmatpush1.msra.mxu0 0.0
    %1580 = vmatprep.subr.mxu0 0.0
    %1581 = vmatpush1.msra.mxu0 0.0
    %1582 = vmatprep.subr.mxu0 0.0
    %1583 = vmatpush1.msra.mxu0 0.0
    %1584 = vmatprep.subr.mxu0 0.0
    %1585 = vmatpush1.msra.mxu0 0.0
    %1586 = vmatprep.subr.mxu0 0.0
    %1587 = vmatpush1.msra.mxu0 0.0
    %1588 = vmatprep.subr.mxu0 0.0
    %1589 = vmatpush1.msra.mxu0 0.0
    %1590 = vmatprep.subr.mxu0 0.0
    %1591 = vmatpush1.msra.mxu0 0.0
    %1592 = vmatprep.subr.mxu0 0.0
    %1593 = vmatpush1.msra.mxu0 0.0
    %1594 = vmatprep.subr.mxu0 0.0
    %1595 = vmatpush1.msra.mxu0 0.0
    %1596 = vmatprep.subr.mxu0 0.0
    %1597 = vmatpush1.msra.mxu0 0.0
    %1598 = vmatprep.subr.mxu0 0.0
    %1599 = vmatpush1.msra.mxu0 0.0
    %1600 = vmatprep.subr.mxu0 0.0
    %1601 = vmatpush1.msra.mxu0 0.0
    %1602 = vmatprep.subr.mxu0 0.0
    %1603 = vmatpush1.msra.mxu0 0.0
    %1604 = vmatprep.subr.mxu0 0.0
    %1605 = vmatpush1.msra.mxu0 0.0
    %1606 = vmatprep.mubr.f32.mxu0 0.0
    %1607 = vmatmul.mubr.f32.gmra.mrb[0].mxu0 %v1540
    %v1608 = vpop.f32.mrb[0].mxu0
    %v1609 = vadd.f32 %v1537, %v1608
    %v1610 = vpop.f32.mrb[0].mxu0
    %1611 = vdwg.mxu0
    %v1612 = vld [vmem:[%s3 + $0x9] sm:$0x1]
    %v1613 = vld [vmem:[%s3 + $0xa] sm:$0x1]
    %v1615 = vsel %vm114, %v1609, 0
    %1617 = vmatprep.subr.mxu0 0.0
    %1618 = vmatpush1.msra.mxu0 %v1511
    %1619 = vmatprep.subr.mxu0 0.0
    %1620 = vmatpush1.msra.mxu0 %v1512
    %1621 = vmatprep.subr.mxu0 0.0
    %1622 = vmatpush1.msra.mxu0 %v1513
    %1623 = vmatprep.subr.mxu0 0.0
    %1624 = vmatpush1.msra.mxu0 %v1514
    %1625 = vmatprep.subr.mxu0 0.0
    %1626 = vmatpush1.msra.mxu0 %v1515
    %1627 = vmatprep.subr.mxu0 0.0
    %1628 = vmatpush1.msra.mxu0 %v1516
    %1629 = vmatprep.subr.mxu0 0.0
    %1630 = vmatpush1.msra.mxu0 %v1517
    %1631 = vmatprep.subr.mxu0 0.0
    %1632 = vmatpush1.msra.mxu0 %v1518
    %1633 = vmatprep.subr.mxu0 0.0
    %1634 = vmatpush1.msra.mxu0 0.0
    %1635 = vmatprep.subr.mxu0 0.0
    %1636 = vmatpush1.msra.mxu0 0.0
    %1637 = vmatprep.subr.mxu0 0.0
    %1638 = vmatpush1.msra.mxu0 0.0
    %1639 = vmatprep.subr.mxu0 0.0
    %1640 = vmatpush1.msra.mxu0 0.0
    %1641 = vmatprep.subr.mxu0 0.0
    %1642 = vmatpush1.msra.mxu0 0.0
    %1643 = vmatprep.subr.mxu0 0.0
    %1644 = vmatpush1.msra.mxu0 0.0
    %1645 = vmatprep.subr.mxu0 0.0
    %1646 = vmatpush1.msra.mxu0 0.0
    %1647 = vmatprep.subr.mxu0 0.0
    %1648 = vmatpush1.msra.mxu0 0.0
    %1649 = vmatprep.subr.mxu0 0.0
    %1650 = vmatpush1.msra.mxu0 0.0
    %1651 = vmatprep.subr.mxu0 0.0
    %1652 = vmatpush1.msra.mxu0 0.0
    %1653 = vmatprep.subr.mxu0 0.0
    %1654 = vmatpush1.msra.mxu0 0.0
    %1655 = vmatprep.subr.mxu0 0.0
    %1656 = vmatpush1.msra.mxu0 0.0
    %1657 = vmatprep.subr.mxu0 0.0
    %1658 = vmatpush1.msra.mxu0 0.0
    %1659 = vmatprep.subr.mxu0 0.0
    %1660 = vmatpush1.msra.mxu0 0.0
    %1661 = vmatprep.subr.mxu0 0.0
    %1662 = vmatpush1.msra.mxu0 0.0
    %1663 = vmatprep.subr.mxu0 0.0
    %1664 = vmatpush1.msra.mxu0 0.0
    %1665 = vmatprep.subr.mxu0 0.0
    %1666 = vmatpush1.msra.mxu0 0.0
    %1667 = vmatprep.subr.mxu0 0.0
    %1668 = vmatpush1.msra.mxu0 0.0
    %1669 = vmatprep.subr.mxu0 0.0
    %1670 = vmatpush1.msra.mxu0 0.0
    %1671 = vmatprep.subr.mxu0 0.0
    %1672 = vmatpush1.msra.mxu0 0.0
    %1673 = vmatprep.subr.mxu0 0.0
    %1674 = vmatpush1.msra.mxu0 0.0
    %1675 = vmatprep.subr.mxu0 0.0
    %1676 = vmatpush1.msra.mxu0 0.0
    %1677 = vmatprep.subr.mxu0 0.0
    %1678 = vmatpush1.msra.mxu0 0.0
    %1679 = vmatprep.subr.mxu0 0.0
    %1680 = vmatpush1.msra.mxu0 0.0
    %1681 = vmatprep.mubr.f32.mxu0 0.0
    %1682 = vmatmul.mubr.f32.gmra.mrb[0].mxu0 %v1615
    %v1683 = vpop.f32.mrb[0].mxu0
    %v1684 = vadd.f32 0.0, %v1683
    %v1685 = vpop.f32.mrb[0].mxu0
    %1686 = vdwg.mxu0
    %v1687 = vmul.f32 %v1609, %v1609
    %v1689 = vsel %vm114, %v1687, 0
    %1691 = vmatprep.subr.mxu0 0.0
    %1692 = vmatpush1.msra.mxu0 %v1511
    %1693 = vmatprep.subr.mxu0 0.0
    %1694 = vmatpush1.msra.mxu0 %v1512
    %1695 = vmatprep.subr.mxu0 0.0
    %1696 = vmatpush1.msra.mxu0 %v1513
    %1697 = vmatprep.subr.mxu0 0.0
    %1698 = vmatpush1.msra.mxu0 %v1514
    %1699 = vmatprep.subr.mxu0 0.0
    %1700 = vmatpush1.msra.mxu0 %v1515
    %1701 = vmatprep.subr.mxu0 0.0
    %1702 = vmatpush1.msra.mxu0 %v1516
    %1703 = vmatprep.subr.mxu0 0.0
    %1704 = vmatpush1.msra.mxu0 %v1517
    %1705 = vmatprep.subr.mxu0 0.0
    %1706 = vmatpush1.msra.mxu0 %v1518
    %1707 = vmatprep.subr.mxu0 0.0
    %1708 = vmatpush1.msra.mxu0 0.0
    %1709 = vmatprep.subr.mxu0 0.0
    %1710 = vmatpush1.msra.mxu0 0.0
    %1711 = vmatprep.subr.mxu0 0.0
    %1712 = vmatpush1.msra.mxu0 0.0
    %1713 = vmatprep.subr.mxu0 0.0
    %1714 = vmatpush1.msra.mxu0 0.0
    %1715 = vmatprep.subr.mxu0 0.0
    %1716 = vmatpush1.msra.mxu0 0.0
    %1717 = vmatprep.subr.mxu0 0.0
    %1718 = vmatpush1.msra.mxu0 0.0
    %1719 = vmatprep.subr.mxu0 0.0
    %1720 = vmatpush1.msra.mxu0 0.0
    %1721 = vmatprep.subr.mxu0 0.0
    %1722 = vmatpush1.msra.mxu0 0.0
    %1723 = vmatprep.subr.mxu0 0.0
    %1724 = vmatpush1.msra.mxu0 0.0
    %1725 = vmatprep.subr.mxu0 0.0
    %1726 = vmatpush1.msra.mxu0 0.0
    %1727 = vmatprep.subr.mxu0 0.0
    %1728 = vmatpush1.msra.mxu0 0.0
    %1729 = vmatprep.subr.mxu0 0.0
    %1730 = vmatpush1.msra.mxu0 0.0
    %1731 = vmatprep.subr.mxu0 0.0
    %1732 = vmatpush1.msra.mxu0 0.0
    %1733 = vmatprep.subr.mxu0 0.0
    %1734 = vmatpush1.msra.mxu0 0.0
    %1735 = vmatprep.subr.mxu0 0.0
    %1736 = vmatpush1.msra.mxu0 0.0
    %1737 = vmatprep.subr.mxu0 0.0
    %1738 = vmatpush1.msra.mxu0 0.0
    %1739 = vmatprep.subr.mxu0 0.0
    %1740 = vmatpush1.msra.mxu0 0.0
    %1741 = vmatprep.subr.mxu0 0.0
    %1742 = vmatpush1.msra.mxu0 0.0
    %1743 = vmatprep.subr.mxu0 0.0
    %1744 = vmatpush1.msra.mxu0 0.0
    %1745 = vmatprep.subr.mxu0 0.0
    %1746 = vmatpush1.msra.mxu0 0.0
    %1747 = vmatprep.subr.mxu0 0.0
    %1748 = vmatpush1.msra.mxu0 0.0
    %1749 = vmatprep.subr.mxu0 0.0
    %1750 = vmatpush1.msra.mxu0 0.0
    %1751 = vmatprep.subr.mxu0 0.0
    %1752 = vmatpush1.msra.mxu0 0.0
    %1753 = vmatprep.subr.mxu0 0.0
    %1754 = vmatpush1.msra.mxu0 0.0
    %1755 = vmatprep.mubr.f32.mxu0 0.0
    %1756 = vmatmul.mubr.f32.gmra.mrb[0].mxu0 %v1689
    %v1757 = vpop.f32.mrb[0].mxu0
    %v1758 = vadd.f32 0.0, %v1757
    %v1759 = vpop.f32.mrb[0].mxu0
    %1760 = vdwg.mxu0
    %v1761 = vmul.f32 %v1684, %v1684
    %v1762 = vsub.f32 %v1758, %v1761
    %v1763 = vsub.f32 %v1609, %v1684
    %v1764 = vadd.f32 %v1762, 1e-05
    %v1765 = vrsqrt.pop %v1764
    %v1766 = vmul.f32 %v1763, %v1765
    %v1767 = vlaneseq
    %v1768 = vshrl.u32 %v1767, 7
    %v1769 = vsub.s32 0, %v1768
    %v1770 = vrot.slane %v1612, %v1769
    %v1771 = vmul.f32 %v1766, %v1770
    %v1772 = vlaneseq
    %v1773 = vshrl.u32 %v1772, 7
    %v1774 = vsub.s32 0, %v1773
    %v1775 = vrot.slane %v1613, %v1774
    %v1776 = vadd.f32 %v1771, %v1775
    %vm1777 = vcmp.gt.f32.partialorder %v1776, 0.0
    %v1778 = vmul.f32 %v1776, 0.01
    %v1779 = vsel %vm1777, %v1776, %v1778
    %s1780 = scalar_lea.vmem %s1, 288
    %v1781 = vld [vmem:[%s1780] sm:$0xff]
    %v1782 = vld [vmem:[%s1780 + $0x8] sm:$0xff]
    %v1783 = vld [vmem:[%s1780 + $0x10] sm:$0xff]
    %v1784 = vld [vmem:[%s1780 + $0x18] sm:$0xff]
    %v1785 = vld [vmem:[%s1780 + $0x20] sm:$0xff]
    %v1786 = vld [vmem:[%s1780 + $0x28] sm:$0xff]
    %v1787 = vld [vmem:[%s1780 + $0x30] sm:$0xff]
    %v1788 = vld [vmem:[%s1780 + $0x38] sm:$0xff]
    %v1789 = vld [vmem:[%s3 + $0xb] sm:$0x1]
    %v1790 = vlaneseq
    %v1791 = vshrl.u32 %v1790, 7
    %v1792 = vsub.s32 0, %v1791
    %v1793 = vrot.slane %v1789, %v1792
    %v1795 = vsel %vm114, %v1779, 0
    %1797 = vmatprep.subr.mxu0 0.0
    %1798 = vmatpush1.msra.mxu0 %v1781
    %1799 = vmatprep.subr.mxu0 0.0
    %1800 = vmatpush1.msra.mxu0 %v1782
    %1801 = vmatprep.subr.mxu0 0.0
    %1802 = vmatpush1.msra.mxu0 %v1783
    %1803 = vmatprep.subr.mxu0 0.0
    %1804 = vmatpush1.msra.mxu0 %v1784
    %1805 = vmatprep.subr.mxu0 0.0
    %1806 = vmatpush1.msra.mxu0 %v1785
    %1807 = vmatprep.subr.mxu0 0.0
    %1808 = vmatpush1.msra.mxu0 %v1786
    %1809 = vmatprep.subr.mxu0 0.0
    %1810 = vmatpush1.msra.mxu0 %v1787
    %1811 = vmatprep.subr.mxu0 0.0
    %1812 = vmatpush1.msra.mxu0 %v1788
    %1813 = vmatprep.subr.mxu0 0.0
    %1814 = vmatpush1.msra.mxu0 0.0
    %1815 = vmatprep.subr.mxu0 0.0
    %1816 = vmatpush1.msra.mxu0 0.0
    %1817 = vmatprep.subr.mxu0 0.0
    %1818 = vmatpush1.msra.mxu0 0.0
    %1819 = vmatprep.subr.mxu0 0.0
    %1820 = vmatpush1.msra.mxu0 0.0
    %1821 = vmatprep.subr.mxu0 0.0
    %1822 = vmatpush1.msra.mxu0 0.0
    %1823 = vmatprep.subr.mxu0 0.0
    %1824 = vmatpush1.msra.mxu0 0.0
    %1825 = vmatprep.subr.mxu0 0.0
    %1826 = vmatpush1.msra.mxu0 0.0
    %1827 = vmatprep.subr.mxu0 0.0
    %1828 = vmatpush1.msra.mxu0 0.0
    %1829 = vmatprep.subr.mxu0 0.0
    %1830 = vmatpush1.msra.mxu0 0.0
    %1831 = vmatprep.subr.mxu0 0.0
    %1832 = vmatpush1.msra.mxu0 0.0
    %1833 = vmatprep.subr.mxu0 0.0
    %1834 = vmatpush1.msra.mxu0 0.0
    %1835 = vmatprep.subr.mxu0 0.0
    %1836 = vmatpush1.msra.mxu0 0.0
    %1837 = vmatprep.subr.mxu0 0.0
    %1838 = vmatpush1.msra.mxu0 0.0
    %1839 = vmatprep.subr.mxu0 0.0
    %1840 = vmatpush1.msra.mxu0 0.0
    %1841 = vmatprep.subr.mxu0 0.0
    %1842 = vmatpush1.msra.mxu0 0.0
    %1843 = vmatprep.subr.mxu0 0.0
    %1844 = vmatpush1.msra.mxu0 0.0
    %1845 = vmatprep.subr.mxu0 0.0
    %1846 = vmatpush1.msra.mxu0 0.0
    %1847 = vmatprep.subr.mxu0 0.0
    %1848 = vmatpush1.msra.mxu0 0.0
    %1849 = vmatprep.subr.mxu0 0.0
    %1850 = vmatpush1.msra.mxu0 0.0
    %1851 = vmatprep.subr.mxu0 0.0
    %1852 = vmatpush1.msra.mxu0 0.0
    %1853 = vmatprep.subr.mxu0 0.0
    %1854 = vmatpush1.msra.mxu0 0.0
    %1855 = vmatprep.subr.mxu0 0.0
    %1856 = vmatpush1.msra.mxu0 0.0
    %1857 = vmatprep.subr.mxu0 0.0
    %1858 = vmatpush1.msra.mxu0 0.0
    %1859 = vmatprep.subr.mxu0 0.0
    %1860 = vmatpush1.msra.mxu0 0.0
    %1861 = vmatprep.mubr.f32.mxu0 0.0
    %1862 = vmatmul.mubr.f32.gmra.mrb[0].mxu0 %v1795
    %v1863 = vpop.f32.mrb[0].mxu0
    %v1864 = vadd.f32 %v1793, %v1863
    %v1865 = vpop.f32.mrb[0].mxu0
    %1866 = vdwg.mxu0
    %v1867 = vld [vmem:[%s3 + $0xc] sm:$0x1]
    %v1868 = vld [vmem:[%s3 + $0xd] sm:$0x1]
    %v1870 = vsel %vm114, %v1864, 0
    %1872 = vmatprep.subr.mxu0 0.0
    %1873 = vmatpush1.msra.mxu0 %v1511
    %1874 = vmatprep.subr.mxu0 0.0
    %1875 = vmatpush1.msra.mxu0 %v1512
    %1876 = vmatprep.subr.mxu0 0.0
    %1877 = vmatpush1.msra.mxu0 %v1513
    %1878 = vmatprep.subr.mxu0 0.0
    %1879 = vmatpush1.msra.mxu0 %v1514
    %1880 = vmatprep.subr.mxu0 0.0
    %1881 = vmatpush1.msra.mxu0 %v1515
    %1882 = vmatprep.subr.mxu0 0.0
    %1883 = vmatpush1.msra.mxu0 %v1516
    %1884 = vmatprep.subr.mxu0 0.0
    %1885 = vmatpush1.msra.mxu0 %v1517
    %1886 = vmatprep.subr.mxu0 0.0
    %1887 = vmatpush1.msra.mxu0 %v1518
    %1888 = vmatprep.subr.mxu0 0.0
    %1889 = vmatpush1.msra.mxu0 0.0
    %1890 = vmatprep.subr.mxu0 0.0
    %1891 = vmatpush1.msra.mxu0 0.0
    %1892 = vmatprep.subr.mxu0 0.0
    %1893 = vmatpush1.msra.mxu0 0.0
    %1894 = vmatprep.subr.mxu0 0.0
    %1895 = vmatpush1.msra.mxu0 0.0
    %1896 = vmatprep.subr.mxu0 0.0
    %1897 = vmatpush1.msra.mxu0 0.0
    %1898 = vmatprep.subr.mxu0 0.0
    %1899 = vmatpush1.msra.mxu0 0.0
    %1900 = vmatprep.subr.mxu0 0.0
    %1901 = vmatpush1.msra.mxu0 0.0
    %1902 = vmatprep.subr.mxu0 0.0
    %1903 = vmatpush1.msra.mxu0 0.0
    %1904 = vmatprep.subr.mxu0 0.0
    %1905 = vmatpush1.msra.mxu0 0.0
    %1906 = vmatprep.subr.mxu0 0.0
    %1907 = vmatpush1.msra.mxu0 0.0
    %1908 = vmatprep.subr.mxu0 0.0
    %1909 = vmatpush1.msra.mxu0 0.0
    %1910 = vmatprep.subr.mxu0 0.0
    %1911 = vmatpush1.msra.mxu0 0.0
    %1912 = vmatprep.subr.mxu0 0.0
    %1913 = vmatpush1.msra.mxu0 0.0
    %1914 = vmatprep.subr.mxu0 0.0
    %1915 = vmatpush1.msra.mxu0 0.0
    %1916 = vmatprep.subr.mxu0 0.0
    %1917 = vmatpush1.msra.mxu0 0.0
    %1918 = vmatprep.subr.mxu0 0.0
    %1919 = vmatpush1.msra.mxu0 0.0
    %1920 = vmatprep.subr.mxu0 0.0
    %1921 = vmatpush1.msra.mxu0 0.0
    %1922 = vmatprep.subr.mxu0 0.0
    %1923 = vmatpush1.msra.mxu0 0.0
    %1924 = vmatprep.subr.mxu0 0.0
    %1925 = vmatpush1.msra.mxu0 0.0
    %1926 = vmatprep.subr.mxu0 0.0
    %1927 = vmatpush1.msra.mxu0 0.0
    %1928 = vmatprep.subr.mxu0 0.0
    %1929 = vmatpush1.msra.mxu0 0.0
    %1930 = vmatprep.subr.mxu0 0.0
    %1931 = vmatpush1.msra.mxu0 0.0
    %1932 = vmatprep.subr.mxu0 0.0
    %1933 = vmatpush1.msra.mxu0 0.0
    %1934 = vmatprep.subr.mxu0 0.0
    %1935 = vmatpush1.msra.mxu0 0.0
    %1936 = vmatprep.mubr.f32.mxu0 0.0
    %1937 = vmatmul.mubr.f32.gmra.mrb[0].mxu0 %v1870
    %v1938 = vpop.f32.mrb[0].mxu0
    %v1939 = vadd.f32 0.0, %v1938
    %v1940 = vpop.f32.mrb[0].mxu0
    %1941 = vdwg.mxu0
    %v1942 = vmul.f32 %v1864, %v1864
    %v1944 = vsel %vm114, %v1942, 0
    %1946 = vmatprep.subr.mxu0 0.0
    %1947 = vmatpush1.msra.mxu0 %v1511
    %1948 = vmatprep.subr.mxu0 0.0
    %1949 = vmatpush1.msra.mxu0 %v1512
    %1950 = vmatprep.subr.mxu0 0.0
    %1951 = vmatpush1.msra.mxu0 %v1513
    %1952 = vmatprep.subr.mxu0 0.0
    %1953 = vmatpush1.msra.mxu0 %v1514
    %1954 = vmatprep.subr.mxu0 0.0
    %1955 = vmatpush1.msra.mxu0 %v1515
    %1956 = vmatprep.subr.mxu0 0.0
    %1957 = vmatpush1.msra.mxu0 %v1516
    %1958 = vmatprep.subr.mxu0 0.0
    %1959 = vmatpush1.msra.mxu0 %v1517
    %1960 = vmatprep.subr.mxu0 0.0
    %1961 = vmatpush1.msra.mxu0 %v1518
    %1962 = vmatprep.subr.mxu0 0.0
    %1963 = vmatpush1.msra.mxu0 0.0
    %1964 = vmatprep.subr.mxu0 0.0
    %1965 = vmatpush1.msra.mxu0 0.0
    %1966 = vmatprep.subr.mxu0 0.0
    %1967 = vmatpush1.msra.mxu0 0.0
    %1968 = vmatprep.subr.mxu0 0.0
    %1969 = vmatpush1.msra.mxu0 0.0
    %1970 = vmatprep.subr.mxu0 0.0
    %1971 = vmatpush1.msra.mxu0 0.0
    %1972 = vmatprep.subr.mxu0 0.0
    %1973 = vmatpush1.msra.mxu0 0.0
    %1974 = vmatprep.subr.mxu0 0.0
    %1975 = vmatpush1.msra.mxu0 0.0
    %1976 = vmatprep.subr.mxu0 0.0
    %1977 = vmatpush1.msra.mxu0 0.0
    %1978 = vmatprep.subr.mxu0 0.0
    %1979 = vmatpush1.msra.mxu0 0.0
    %1980 = vmatprep.subr.mxu0 0.0
    %1981 = vmatpush1.msra.mxu0 0.0
    %1982 = vmatprep.subr.mxu0 0.0
    %1983 = vmatpush1.msra.mxu0 0.0
    %1984 = vmatprep.subr.mxu0 0.0
    %1985 = vmatpush1.msra.mxu0 0.0
    %1986 = vmatprep.subr.mxu0 0.0
    %1987 = vmatpush1.msra.mxu0 0.0
    %1988 = vmatprep.subr.mxu0 0.0
    %1989 = vmatpush1.msra.mxu0 0.0
    %1990 = vmatprep.subr.mxu0 0.0
    %1991 = vmatpush1.msra.mxu0 0.0
    %1992 = vmatprep.subr.mxu0 0.0
    %1993 = vmatpush1.msra.mxu0 0.0
    %1994 = vmatprep.subr.mxu0 0.0
    %1995 = vmatpush1.msra.mxu0 0.0
    %1996 = vmatprep.subr.mxu0 0.0
    %1997 = vmatpush1.msra.mxu0 0.0
    %1998 = vmatprep.subr.mxu0 0.0
    %1999 = vmatpush1.msra.mxu0 0.0
    %2000 = vmatprep.subr.mxu0 0.0
    %2001 = vmatpush1.msra.mxu0 0.0
    %2002 = vmatprep.subr.mxu0 0.0
    %2003 = vmatpush1.msra.mxu0 0.0
    %2004 = vmatprep.subr.mxu0 0.0
    %2005 = vmatpush1.msra.mxu0 0.0
    %2006 = vmatprep.subr.mxu0 0.0
    %2007 = vmatpush1.msra.mxu0 0.0
    %2008 = vmatprep.subr.mxu0 0.0
    %2009 = vmatpush1.msra.mxu0 0.0
    %2010 = vmatprep.mubr.f32.mxu0 0.0
    %2011 = vmatmul.mubr.f32.gmra.mrb[0].mxu0 %v1944
    %v2012 = vpop.f32.mrb[0].mxu0
    %v2013 = vadd.f32 0.0, %v2012
    %v2014 = vpop.f32.mrb[0].mxu0
    %2015 = vdwg.mxu0
    %v2016 = vmul.f32 %v1939, %v1939
    %v2017 = vsub.f32 %v2013, %v2016
    %v2018 = vsub.f32 %v1864, %v1939
    %v2019 = vadd.f32 %v2017, 1e-05
    %v2020 = vrsqrt.pop %v2019
    %v2021 = vmul.f32 %v2018, %v2020
    %v2022 = vlaneseq
    %v2023 = vshrl.u32 %v2022, 7
    %v2024 = vsub.s32 0, %v2023
    %v2025 = vrot.slane %v1867, %v2024
    %v2026 = vmul.f32 %v2021, %v2025
    %v2027 = vlaneseq
    %v2028 = vshrl.u32 %v2027, 7
    %v2029 = vsub.s32 0, %v2028
    %v2030 = vrot.slane %v1868, %v2029
    %v2031 = vadd.f32 %v2026, %v2030
    %vm2032 = vcmp.gt.f32.partialorder %v2031, 0.0
    %v2033 = vmul.f32 %v2031, 0.01
    %v2034 = vsel %vm2032, %v2031, %v2033
    %s2035 = scalar_lea.vmem %s1, 384
    %v2036 = vld [vmem:[%s2035] sm:$0xff]
    %v2037 = vld [vmem:[%s2035 + $0x8] sm:$0xff]
    %v2038 = vld [vmem:[%s2035 + $0x10] sm:$0xff]
    %v2039 = vld [vmem:[%s2035 + $0x18] sm:$0xff]
    %v2040 = vld [vmem:[%s2035 + $0x20] sm:$0xff]
    %v2041 = vld [vmem:[%s2035 + $0x28] sm:$0xff]
    %v2042 = vld [vmem:[%s2035 + $0x30] sm:$0xff]
    %v2043 = vld [vmem:[%s2035 + $0x38] sm:$0xff]
    %v2044 = vld [vmem:[%s3 + $0xe] sm:$0x1]
    %v2045 = vlaneseq
    %v2046 = vshrl.u32 %v2045, 7
    %v2047 = vsub.s32 0, %v2046
    %v2048 = vrot.slane %v2044, %v2047
    %v2050 = vsel %vm114, %v2034, 0
    %2052 = vmatprep.subr.mxu0 0.0
    %2053 = vmatpush1.msra.mxu0 %v2036
    %2054 = vmatprep.subr.mxu0 0.0
    %2055 = vmatpush1.msra.mxu0 %v2037
    %2056 = vmatprep.subr.mxu0 0.0
    %2057 = vmatpush1.msra.mxu0 %v2038
    %2058 = vmatprep.subr.mxu0 0.0
    %2059 = vmatpush1.msra.mxu0 %v2039
    %2060 = vmatprep.subr.mxu0 0.0
    %2061 = vmatpush1.msra.mxu0 %v2040
    %2062 = vmatprep.subr.mxu0 0.0
    %2063 = vmatpush1.msra.mxu0 %v2041
    %2064 = vmatprep.subr.mxu0 0.0
    %2065 = vmatpush1.msra.mxu0 %v2042
    %2066 = vmatprep.subr.mxu0 0.0
    %2067 = vmatpush1.msra.mxu0 %v2043
    %2068 = vmatprep.subr.mxu0 0.0
    %2069 = vmatpush1.msra.mxu0 0.0
    %2070 = vmatprep.subr.mxu0 0.0
    %2071 = vmatpush1.msra.mxu0 0.0
    %2072 = vmatprep.subr.mxu0 0.0
    %2073 = vmatpush1.msra.mxu0 0.0
    %2074 = vmatprep.subr.mxu0 0.0
    %2075 = vmatpush1.msra.mxu0 0.0
    %2076 = vmatprep.subr.mxu0 0.0
    %2077 = vmatpush1.msra.mxu0 0.0
    %2078 = vmatprep.subr.mxu0 0.0
    %2079 = vmatpush1.msra.mxu0 0.0
    %2080 = vmatprep.subr.mxu0 0.0
    %2081 = vmatpush1.msra.mxu0 0.0
    %2082 = vmatprep.subr.mxu0 0.0
    %2083 = vmatpush1.msra.mxu0 0.0
    %2084 = vmatprep.subr.mxu0 0.0
    %2085 = vmatpush1.msra.mxu0 0.0
    %2086 = vmatprep.subr.mxu0 0.0
    %2087 = vmatpush1.msra.mxu0 0.0
    %2088 = vmatprep.subr.mxu0 0.0
    %2089 = vmatpush1.msra.mxu0 0.0
    %2090 = vmatprep.subr.mxu0 0.0
    %2091 = vmatpush1.msra.mxu0 0.0
    %2092 = vmatprep.subr.mxu0 0.0
    %2093 = vmatpush1.msra.mxu0 0.0
    %2094 = vmatprep.subr.mxu0 0.0
    %2095 = vmatpush1.msra.mxu0 0.0
    %2096 = vmatprep.subr.mxu0 0.0
    %2097 = vmatpush1.msra.mxu0 0.0
    %2098 = vmatprep.subr.mxu0 0.0
    %2099 = vmatpush1.msra.mxu0 0.0
    %2100 = vmatprep.subr.mxu0 0.0
    %2101 = vmatpush1.msra.mxu0 0.0
    %2102 = vmatprep.subr.mxu0 0.0
    %2103 = vmatpush1.msra.mxu0 0.0
    %2104 = vmatprep.subr.mxu0 0.0
    %2105 = vmatpush1.msra.mxu0 0.0
    %2106 = vmatprep.subr.mxu0 0.0
    %2107 = vmatpush1.msra.mxu0 0.0
    %2108 = vmatprep.subr.mxu0 0.0
    %2109 = vmatpush1.msra.mxu0 0.0
    %2110 = vmatprep.subr.mxu0 0.0
    %2111 = vmatpush1.msra.mxu0 0.0
    %2112 = vmatprep.subr.mxu0 0.0
    %2113 = vmatpush1.msra.mxu0 0.0
    %2114 = vmatprep.subr.mxu0 0.0
    %2115 = vmatpush1.msra.mxu0 0.0
    %2116 = vmatprep.mubr.f32.mxu0 0.0
    %2117 = vmatmul.mubr.f32.gmra.mrb[0].mxu0 %v2050
    %v2118 = vpop.f32.mrb[0].mxu0
    %v2119 = vadd.f32 %v2048, %v2118
    %v2120 = vpop.f32.mrb[0].mxu0
    %2121 = vdwg.mxu0
    %v2122 = vxor.u32 %v2119, 2147483648
    %v2123 = vmul.f32 %v2122, 1.442695
    %v2124 = vpow.pop %v2123
    %v2125 = vadd.f32 %v2124, 1.0
    %v2126 = vrcp.pop %v2125
    %v2127 = vmul.f32 1.0, %v2126
    %v2128 = vmul.f32 %v2127, 6.2831855
    %v2129 = vand.u32 2147483647, %v2128
    %vm2130 = vcmp.le.f32.partialorder %v2129, 0.7853982
    %vm2131 = vcmp.lt.s32.totalorder %v2128, 0
    %v2132 = vand.u32 %v2128, 2139095040
    %v2133 = vshrl.u32 %v2132, 23
    %v2134 = vsub.s32 %v2133, 127
    %v2135 = vand.u32 2147483647, %v2128
    %v2136 = vand.u32 %v2135, 8388607
    %v2137 = vor.u32 %v2136, 8388608
    %v2138 = vsub.s32 0, %v2137
    %v2139 = vadd.s32 %v2134, 1
    %vm2140 = vcmp.gt.s32.totalorder %v2139, 0
    %v2141 = vsel %vm2140, %v2139, 0
    %v2142 = vshrl.u32 %v2141, 5
    %v2143 = vand.u32 %v2141, 31
    %v2144 = vsub.s32 32, %v2143
    %v2145 = vshrl.u32 683565275, %v2144
    %v2146 = vshll.u32 683565275, %v2143
    %v2147 = vshrl.u32 2475754826, %v2144
    %v2148 = vor.u32 %v2146, %v2147
    %v2149 = vshll.u32 2475754826, %v2143
    %v2150 = vshrl.u32 2131351028, %v2144
    %v2151 = vor.u32 %v2149, %v2150
    %v2152 = vshll.u32 2131351028, %v2143
    %v2153 = vshrl.u32 2102212464, %v2144
    %v2154 = vor.u32 %v2152, %v2153
    %v2155 = vshll.u32 2102212464, %v2143
    %v2156 = vshrl.u32 920167782, %v2144
    %v2157 = vor.u32 %v2155, %v2156
    %v2158 = vshll.u32 920167782, %v2143
    %v2159 = vshrl.u32 1326507024, %v2144
    %v2160 = vor.u32 %v2158, %v2159
    %vm2161 = vcmp.lt.s32.totalorder %v2142, 1
    %vm2162 = vcmp.lt.s32.totalorder %v2142, 2
    %vm2163 = vcmp.lt.s32.totalorder %v2142, 3
    %vm2164 = vcmp.lt.s32.totalorder %v2142, 4
    %v2165 = vsel %vm2161, %v2145, %v2148
    %v2166 = vsel %vm2164, %v2154, 2102212464
    %v2167 = vsel %vm2163, %v2151, %v2166
    %v2168 = vsel %vm2162, %v2165, %v2167
    %v2169 = vsel %vm2161, %v2148, %v2151
    %v2170 = vsel %vm2164, %v2157, 920167782
    %v2171 = vsel %vm2163, %v2154, %v2170
    %v2172 = vsel %vm2162, %v2169, %v2171
    %v2173 = vsel %vm2161, %v2151, %v2154
    %v2174 = vsel %vm2164, %v2160, 1326507024
    %v2175 = vsel %vm2163, %v2157, %v2174
    %v2176 = vsel %vm2162, %v2173, %v2175
    %v2177 = vshll.u32 %v2137, 8
    %v2178 = vmul.u32.u64.compose %v2177, %v2176
    %v2179 = vextract.low.u32 %v2178
    %v2180 = vextract.high.u32 %v2178
    %v2181 = vmul.u32.u64.compose %v2177, %v2172
    %v2182 = vextract.low.u32 %v2181
    %v2183 = vextract.high.u32 %v2181
    %v2184 = vmul.u32 %v2177, %v2168
    %v2185 = vadd.s32 %v2180, %v2182
    %vm2186 = vc.u32 %v2180, %v2182
    %v2187 = vadd.s32 %v2183, 1
    %v2188 = vsel %vm2186, %v2187, %v2183
    %v2189 = vadd.s32 %v2184, %v2188
    %v2190 = vadd.s32 %v2189, 536870912
    %v2191 = vshrl.u32 %v2190, 30
    %v2192 = vshll.u32 %v2191, 30
    %v2193 = vsub.s32 %v2189, %v2192
    %vm2194 = vcmp.lt.s32.totalorder %v2193, 0
    %v2195 = vsub.s32 0, %v2193
    %v2196 = vsel %vm2194, %v2195, %v2193
    %v2197 = vclz %v2196
    %v2198 = vsub.s32 %v2197, 2
    %vm2199 = vcmp.gt.s32.totalorder 0, %v2198
    %v2200 = vsel %vm2199, 0, %v2198
    %v2201 = vsub.s32 32, %v2200
    %v2202 = vshll.u32 %v2193, %v2200
    %v2203 = vshrl.u32 %v2185, %v2201
    %v2204 = vor.u32 %v2202, %v2203
    %v2205 = vsub.s32 4294967266, %v2200
    %v2206 = vadd.s32 %v2205, 127
    %v2207 = vshll.u32 %v2206, 23
    %v2208 = vor.u32 4788187, %v2207
    %v2209 = vand.u32 2147483647, %v2208
    %v2211 = vcvt.s32.f32 %v2204
    %v2212 = vmul.f32 %v2211, %v2209
    %v2213 = vxor.u32 %v2212, 2147483648
    %v2214 = vsel %vm2131, %v2213, %v2212
    %v2215 = vsub.s32 4, %v2191
    %v2216 = vsel %vm2131, %v2215, %v2191
    %v2217 = vsel %vm2130, %v2128, %v2214
    %v2218 = vsel %vm2130, 0, %v2216
    %v2219 = vcosq.f32.pop %v2217
    %v2220 = vsinq.f32.pop %v2217
    %vm2221 = vweird.f32 %v2128
    %v2222 = vand.u32 %v2218, 3
    %vm2223 = vcmp.lt.s32.totalorder %v2222, 2
    %vm2224 = vcmp.eq.s32.totalorder %v2222, 0
    %v2225 = vxor.u32 %v2220, 2147483648
    %v2226 = vsel %vm2224, %v2219, %v2225
    %vm2227 = vcmp.eq.s32.totalorder %v2222, 2
    %v2228 = vxor.u32 %v2219, 2147483648
    %v2229 = vsel %vm2227, %v2228, %v2220
    %v2230 = vsel %vm2223, %v2226, %v2229
    %v2231 = vsel %vm2221, nan, %v2230
    %2233 = vrot.lane.b32.xlu0 %v2231, 96
    %v2234 = vpop.permute.xlu0 %2233
    %v2236 = vmul.f32 %v2127, %v2234
    %2237 = vst.msk [vmem:[#allocation3] sm:$0xff] %vm628, %v2236
    %v2238 = vand.u32 2147483647, %v2128
    %vm2239 = vcmp.le.f32.partialorder %v2238, 0.7853982
    %vm2240 = vcmp.lt.s32.totalorder %v2128, 0
    %v2241 = vand.u32 %v2128, 2139095040
    %v2242 = vshrl.u32 %v2241, 23
    %v2243 = vsub.s32 %v2242, 127
    %v2244 = vand.u32 2147483647, %v2128
    %v2245 = vand.u32 %v2244, 8388607
    %v2246 = vor.u32 %v2245, 8388608
    %v2247 = vsub.s32 0, %v2246
    %v2248 = vadd.s32 %v2243, 1
    %vm2249 = vcmp.gt.s32.totalorder %v2248, 0
    %v2250 = vsel %vm2249, %v2248, 0
    %v2251 = vshrl.u32 %v2250, 5
    %v2252 = vand.u32 %v2250, 31
    %v2253 = vsub.s32 32, %v2252
    %v2254 = vshrl.u32 683565275, %v2253
    %v2255 = vshll.u32 683565275, %v2252
    %v2256 = vshrl.u32 2475754826, %v2253
    %v2257 = vor.u32 %v2255, %v2256
    %v2258 = vshll.u32 2475754826, %v2252
    %v2259 = vshrl.u32 2131351028, %v2253
    %v2260 = vor.u32 %v2258, %v2259
    %v2261 = vshll.u32 2131351028, %v2252
    %v2262 = vshrl.u32 2102212464, %v2253
    %v2263 = vor.u32 %v2261, %v2262
    %v2264 = vshll.u32 2102212464, %v2252
    %v2265 = vshrl.u32 920167782, %v2253
    %v2266 = vor.u32 %v2264, %v2265
    %v2267 = vshll.u32 920167782, %v2252
    %v2268 = vshrl.u32 1326507024, %v2253
    %v2269 = vor.u32 %v2267, %v2268
    %vm2270 = vcmp.lt.s32.totalorder %v2251, 1
    %vm2271 = vcmp.lt.s32.totalorder %v2251, 2
    %vm2272 = vcmp.lt.s32.totalorder %v2251, 3
    %vm2273 = vcmp.lt.s32.totalorder %v2251, 4
    %v2274 = vsel %vm2270, %v2254, %v2257
    %v2275 = vsel %vm2273, %v2263, 2102212464
    %v2276 = vsel %vm2272, %v2260, %v2275
    %v2277 = vsel %vm2271, %v2274, %v2276
    %v2278 = vsel %vm2270, %v2257, %v2260
    %v2279 = vsel %vm2273, %v2266, 920167782
    %v2280 = vsel %vm2272, %v2263, %v2279
    %v2281 = vsel %vm2271, %v2278, %v2280
    %v2282 = vsel %vm2270, %v2260, %v2263
    %v2283 = vsel %vm2273, %v2269, 1326507024
    %v2284 = vsel %vm2272, %v2266, %v2283
    %v2285 = vsel %vm2271, %v2282, %v2284
    %v2286 = vshll.u32 %v2246, 8
    %v2287 = vmul.u32.u64.compose %v2286, %v2285
    %v2288 = vextract.low.u32 %v2287
    %v2289 = vextract.high.u32 %v2287
    %v2290 = vmul.u32.u64.compose %v2286, %v2281
    %v2291 = vextract.low.u32 %v2290
    %v2292 = vextract.high.u32 %v2290
    %v2293 = vmul.u32 %v2286, %v2277
    %v2294 = vadd.s32 %v2289, %v2291
    %vm2295 = vc.u32 %v2289, %v2291
    %v2296 = vadd.s32 %v2292, 1
    %v2297 = vsel %vm2295, %v2296, %v2292
    %v2298 = vadd.s32 %v2293, %v2297
    %v2299 = vadd.s32 %v2298, 536870912
    %v2300 = vshrl.u32 %v2299, 30
    %v2301 = vshll.u32 %v2300, 30
    %v2302 = vsub.s32 %v2298, %v2301
    %vm2303 = vcmp.lt.s32.totalorder %v2302, 0
    %v2304 = vsub.s32 0, %v2302
    %v2305 = vsel %vm2303, %v2304, %v2302
    %v2306 = vclz %v2305
    %v2307 = vsub.s32 %v2306, 2
    %vm2308 = vcmp.gt.s32.totalorder 0, %v2307
    %v2309 = vsel %vm2308, 0, %v2307
    %v2310 = vsub.s32 32, %v2309
    %v2311 = vshll.u32 %v2302, %v2309
    %v2312 = vshrl.u32 %v2294, %v2310
    %v2313 = vor.u32 %v2311, %v2312
    %v2314 = vsub.s32 4294967266, %v2309
    %v2315 = vadd.s32 %v2314, 127
    %v2316 = vshll.u32 %v2315, 23
    %v2317 = vor.u32 4788187, %v2316
    %v2318 = vand.u32 2147483647, %v2317
    %v2320 = vcvt.s32.f32 %v2313
    %v2321 = vmul.f32 %v2320, %v2318
    %v2322 = vxor.u32 %v2321, 2147483648
    %v2323 = vsel %vm2240, %v2322, %v2321
    %v2324 = vsub.s32 4, %v2300
    %v2325 = vsel %vm2240, %v2324, %v2300
    %v2326 = vsel %vm2239, %v2128, %v2323
    %v2327 = vsel %vm2239, 0, %v2325
    %v2328 = vcosq.f32.pop %v2326
    %v2329 = vsinq.f32.pop %v2326
    %vm2330 = vweird.f32 %v2128
    %v2331 = vadd.s32 %v2327, 3
    %v2332 = vand.u32 %v2331, 3
    %vm2333 = vcmp.lt.s32.totalorder %v2332, 2
    %vm2334 = vcmp.eq.s32.totalorder %v2332, 0
    %v2335 = vxor.u32 %v2329, 2147483648
    %v2336 = vsel %vm2334, %v2328, %v2335
    %vm2337 = vcmp.eq.s32.totalorder %v2332, 2
    %v2338 = vxor.u32 %v2328, 2147483648
    %v2339 = vsel %vm2337, %v2338, %v2329
    %v2340 = vsel %vm2333, %v2336, %v2339
    %v2341 = vsel %vm2330, nan, %v2340
    %2343 = vrot.lane.b32.xlu0 %v2341, 96
    %v2344 = vpop.permute.xlu0 %2343
    %v2346 = vmul.f32 %v2127, %v2344
    %2348 = vrot.lane.b32.xlu0 %v2346, 32
    %v2349 = vpop.permute.xlu0 %2348
    %vm2351 = vcmask 523520
    %2352 = vst.msk [vmem:[#allocation3] sm:$0xff] %vm2351, %v2349
    // Predicated region
    $region18: #{tpu_custom_call.1} parent=1 // pred_check
      _
    $region19: #{tpu_custom_call.1} parent=1 // pred_check_branch
      %2354 = sbr.rel (0) target = $region21
    $region20: #{tpu_custom_call.1} parent=1 // pred_region
      %s2356 = ssub.s32 128, 128
      %2357 = vsyncadd [#allocation4], %s2356
      %s2359 = sshll.u32 [#allocation3], 4
      %s2360 = int_to_ptr.vmem [resolvable:$true] %s2359
      %2362 = dma.vmem_to_hbm [thread:$0]  %s2360, 128, %s4, [#allocation4]
    $region21: #{tpu_custom_call.1} parent=1 // pred_fallthru
      _
    // Predicated region
    $region22: #{tpu_custom_call.1} parent=1 // pred_check
      _
    $region23: #{tpu_custom_call.1} parent=1 // pred_check_branch
      %2364 = sbr.rel (0) target = $region25
    $region24: #{tpu_custom_call.1} parent=1 // pred_region
      %2365 = dma.done [#allocation4], 128
    $region25: #{tpu_custom_call.1} parent=1 // pred_fallthru
      _
    %2366 = vsyncpa [#allocation4], 1

</llo_original>
